<compile_context>
chip_gen: v6e
topology: v6e:2x2x1
jax: 0.10.0
libtpu: 0.0.40
codegen_flags: <defaults>
</compile_context>

<pallas_src>
import functools

import jax
import jax.numpy as jnp
from jax import lax
from jax.experimental import pallas as pl
from jax.experimental.pallas import tpu as pltpu

EPS = 1e-5


# --------------------------------------------------------------------------
# Generation-aware sizing
# --------------------------------------------------------------------------
def _vmem_budget_bytes():
    """Scoped-VMEM budget with headroom below physical (v7x has only 64 MiB)."""
    cap = 64 * 1024 * 1024  # conservative fallback
    try:
        cap = int(pltpu.get_tpu_info().vmem_capacity_bytes)
    except Exception:
        pass
    # ~3/4 of physical: ~96 MiB on 128-MiB chips (v5e/v6e), ~48 MiB on v7x.
    return min(cap * 3 // 4, 96 * 1024 * 1024)


def _choose_batch_tile(N, Cin, Cout, HW, budget):
    """Images per grid step: largest divisor of N whose blocks fit the budget."""
    per_image = 2 * (Cin + Cout) * HW * 4          # double-buffered in+out blocks
    slack = 2 * 1024 * 1024                        # params / masks / scratch
    best = 1
    for b in range(1, min(N, 8) + 1):              # cap unrolled per-image loop
        if N % b:
            continue
        if b != N and (b * Cin) % 8 != 0:          # keep sublane-aligned blocks
            continue
        if b * per_image + slack <= budget:
            best = b
    return best


# --------------------------------------------------------------------------
# In-kernel building blocks (traced inline into each pass)
# --------------------------------------------------------------------------
def _depthwise(x, masks, dww, dwb, W):
    """Depthwise 3x3 conv (padding=1) on a flattened (rows, H*W) block.

    x     : (R, HW)  rows = images*channels, spatial flattened on the lane axis
    masks : (8, HW)  precomputed boundary masks (taps k=0..8, centre skipped)
    dww   : (R, 9)   per-row 3x3 taps, row-major
    dwb   : (R, 1)   per-row bias
    """
    HW = x.shape[-1]
    acc = dww[:, 4:5] * x + dwb                    # centre tap: no shift, no mask
    m = 0
    for k in range(9):
        if k == 4:
            continue
        oi, oj = k // 3 - 1, k % 3 - 1             # offsets in {-1, 0, +1}
        off = oi * W + oj
        # XLU lane rotation; wrapped elements land only on boundary positions,
        # which the hoisted mask zeroes (this realises padding=1).
        shifted = pltpu.roll(x, (-off) % HW, 1)
        acc = acc + dww[:, k:k + 1] * (shifted * masks[m:m + 1, :])
        m += 1
    return acc


def _pointwise_images(yn, pww, pwb, Cin, B):
    """Per-image 1x1 conv. yn: (B*Cin, HW) -> list of B (Cout, HW) slabs."""
    use_mxu = Cin >= 16                            # tiny channel counts stay on the VPU
    outs = []
    for b in range(B):
        yb = yn[b * Cin:(b + 1) * Cin, :]
        if use_mxu:
            zb = jnp.dot(pww, yb, preferred_element_type=jnp.float32) + pwb
        else:
            zb = pwb + pww[:, 0:1] * yb[0:1, :]
            for c in range(1, Cin):
                zb = zb + pww[:, c:c + 1] * yb[c:c + 1, :]
        outs.append(zb)
    return outs


# --------------------------------------------------------------------------
# Pass 1: BN1 batch statistics (sum, sumsq of depthwise output)
# --------------------------------------------------------------------------
def _bn1_stats_kernel(x_ref, masks_ref, dww_ref, dwb_ref, s_ref, acc_ref, *, W):
    @pl.when(pl.program_id(0) == 0)
    def _init():
        acc_ref[...] = jnp.zeros_like(acc_ref)

    y = _depthwise(x_ref[...], masks_ref[...], dww_ref[...], dwb_ref[...], W)
    acc_ref[:, 0:1] += jnp.sum(y, axis=1, keepdims=True)
    acc_ref[:, 1:2] += jnp.sum(y * y, axis=1, keepdims=True)

    @pl.when(pl.program_id(0) == pl.num_programs(0) - 1)
    def _done():
        s_ref[...] = acc_ref[...]


# --------------------------------------------------------------------------
# Pass 2: BN2 batch statistics (sum, sumsq of pointwise output)
# --------------------------------------------------------------------------
def _bn2_stats_kernel(x_ref, masks_ref, dww_ref, dwb_ref, sc1_ref, sh1_ref,
                      pww_ref, pwb_ref, s_ref, acc_ref, *, W, Cin, B):
    @pl.when(pl.program_id(0) == 0)
    def _init():
        acc_ref[...] = jnp.zeros_like(acc_ref)

    Cout = pwb_ref.shape[0]
    y = _depthwise(x_ref[...], masks_ref[...], dww_ref[...], dwb_ref[...], W)
    yn = jnp.maximum(y * sc1_ref[...] + sh1_ref[...], 0.0)
    zs = _pointwise_images(yn, pww_ref[...], pwb_ref[...], Cin, B)
    for b, zb in enumerate(zs):
        lo = b * Cout
        acc_ref[lo:lo + Cout, 0:1] += jnp.sum(zb, axis=1, keepdims=True)
        acc_ref[lo:lo + Cout, 1:2] += jnp.sum(zb * zb, axis=1, keepdims=True)

    @pl.when(pl.program_id(0) == pl.num_programs(0) - 1)
    def _done():
        s_ref[...] = acc_ref[...]


# --------------------------------------------------------------------------
# Pass 3: full fused forward (BNs folded into per-channel scale/shift)
# --------------------------------------------------------------------------
def _fused_fwd_kernel(x_ref, masks_ref, dww_ref, dwb_ref, sc1_ref, sh1_ref,
                      pww_ref, pwb_ref, sc2_ref, sh2_ref, o_ref, *, W, Cin, B):
    Cout = pwb_ref.shape[0]
    y = _depthwise(x_ref[...], masks_ref[...], dww_ref[...], dwb_ref[...], W)
    yn = jnp.maximum(y * sc1_ref[...] + sh1_ref[...], 0.0)
    zs = _pointwise_images(yn, pww_ref[...], pwb_ref[...], Cin, B)
    for b, zb in enumerate(zs):
        o_ref[b * Cout:(b + 1) * Cout, :] = jnp.maximum(
            zb * sc2_ref[...] + sh2_ref[...], 0.0)


# --------------------------------------------------------------------------
# Wrapper
# --------------------------------------------------------------------------
@jax.jit
def depthwise_separable_conv(x, dw_w, dw_b, pw_w, pw_b, g_dw, b_dw, g_pw, b_pw):
    """x: (N, Cin, H, W) NCHW float32.  Returns (N, Cout, H, W)."""
    N, Cin, H, W = x.shape
    Cout = pw_w.shape[0]
    HW = H * W
    M = N * HW

    budget = _vmem_budget_bytes()
    B = _choose_batch_tile(N, Cin, Cout, HW, budget)
    G = N // B

    # Pure reshape only -- no transposes, no pads.
    x_flat = x.reshape(N * Cin, HW).astype(jnp.float32)

    # Hoisted halo masks: one row per off-centre tap (k = 0..8, skipping 4).
    p = jnp.arange(HW, dtype=jnp.int32)
    r, c = p // W, p % W
    mrows = []
    for k in range(9):
        if k == 4:
            continue
        oi, oj = k // 3 - 1, k % 3 - 1
        mrows.append(((r + oi >= 0) & (r + oi < H) &
                      (c + oj >= 0) & (c + oj < W)).astype(jnp.float32))
    masks = jnp.stack(mrows, axis=0)                              # (8, HW)

    # Per-row parameters for the flattened (B*Cin, HW) layout.
    dww = jnp.tile(dw_w.reshape(Cin, 9).astype(jnp.float32), (B, 1))   # (B*Cin, 9)
    dwb = jnp.tile(dw_b.reshape(Cin, 1).astype(jnp.float32), (B, 1))   # (B*Cin, 1)
    pww = pw_w.reshape(Cout, Cin).astype(jnp.float32)
    pwb = pw_b.reshape(Cout, 1).astype(jnp.float32)

    x_spec = pl.BlockSpec((B * Cin, HW), lambda n: (n, 0))
    param = lambda a: pl.BlockSpec(a.shape, lambda n: (0, 0))

    params_arb = pltpu.CompilerParams(
        dimension_semantics=("arbitrary",),          # stats accumulate over batch
        vmem_limit_bytes=budget)
    params_par = pltpu.CompilerParams(
        dimension_semantics=("parallel",),           # megacore on v7x
        vmem_limit_bytes=budget)

    # ---- pass 1: BN1 statistics ------------------------------------------
    stats1 = pl.pallas_call(
        functools.partial(_bn1_stats_kernel, W=W),
        out_shape=jax.ShapeDtypeStruct((B * Cin, 2), jnp.float32),
        grid=(G,),
        in_specs=[x_spec, param(masks), param(dww), param(dwb)],
        out_specs=pl.BlockSpec((B * Cin, 2), lambda n: (0, 0)),
        scratch_shapes=[pltpu.VMEM((B * Cin, 2), jnp.float32)],
        compiler_params=params_arb,
    )(x_flat, masks, dww, dwb)

    s1 = stats1.reshape(B, Cin, 2).sum(axis=0)
    mean1 = s1[:, 0] / M
    var1 = jnp.maximum(s1[:, 1] / M - mean1 * mean1, 0.0)
    a1 = g_dw * lax.rsqrt(var1 + EPS)
    sc1 = jnp.tile(a1.reshape(Cin, 1), (B, 1)).astype(jnp.float32)
    sh1 = jnp.tile((b_dw - mean1 * a1).reshape(Cin, 1), (B, 1)).astype(jnp.float32)

    # ---- pass 2: BN2 statistics ------------------------------------------
    stats2 = pl.pallas_call(
        functools.partial(_bn2_stats_kernel, W=W, Cin=Cin, B=B),
        out_shape=jax.ShapeDtypeStruct((B * Cout, 2), jnp.float32),
        grid=(G,),
        in_specs=[x_spec, param(masks), param(dww), param(dwb),
                  param(sc1), param(sh1), param(pww), param(pwb)],
        out_specs=pl.BlockSpec((B * Cout, 2), lambda n: (0, 0)),
        scratch_shapes=[pltpu.VMEM((B * Cout, 2), jnp.float32)],
        compiler_params=params_arb,
    )(x_flat, masks, dww, dwb, sc1, sh1, pww, pwb)

    s2 = stats2.reshape(B, Cout, 2).sum(axis=0)
    mean2 = s2[:, 0] / M
    var2 = jnp.maximum(s2[:, 1] / M - mean2 * mean2, 0.0)
    a2 = g_pw * lax.rsqrt(var2 + EPS)
    sc2 = a2.reshape(Cout, 1).astype(jnp.float32)
    sh2 = (b_pw - mean2 * a2).reshape(Cout, 1).astype(jnp.float32)

    # ---- pass 3: fused forward, lane-dense (N*Cout, HW) output ------------
    out = pl.pallas_call(
        functools.partial(_fused_fwd_kernel, W=W, Cin=Cin, B=B),
        out_shape=jax.ShapeDtypeStruct((N * Cout, HW), jnp.float32),
        grid=(G,),
        in_specs=[x_spec, param(masks), param(dww), param(dwb),
                  param(sc1), param(sh1), param(pww), param(pwb),
                  param(sc2), param(sh2)],
        out_specs=pl.BlockSpec((B * Cout, HW), lambda n: (n, 0)),
        compiler_params=params_par,
    )(x_flat, masks, dww, dwb, sc1, sh1, pww, pwb, sc2, sh2)

    return out.reshape(N, Cout, H, W)


# --------------------------------------------------------------------------
# Pure-JAX reference mirroring the PyTorch module (training-mode BN)
# --------------------------------------------------------------------------
def reference_forward(x, dw_w, dw_b, pw_w, pw_b, g_dw, b_dw, g_pw, b_pw):
    C = x.shape[1]
    y = lax.conv_general_dilated(
        x, dw_w.reshape(C, 1, 3, 3), (1, 1), 'SAME',
        dimension_numbers=('NCHW', 'OIHW', 'NCHW'), feature_group_count=C)
    y = y + dw_b.reshape(1, -1, 1, 1)
    m = y.mean(axis=(0, 2, 3), keepdims=True)
    v = y.var(axis=(0, 2, 3), keepdims=True)
    y = (y - m) / jnp.sqrt(v + EPS) * g_dw.reshape(1, -1, 1, 1) + b_dw.reshape(1, -1, 1, 1)
    y = jnp.maximum(y, 0.0)
    Co = pw_w.shape[0]
    z = lax.conv_general_dilated(
        y, pw_w.reshape(Co, C, 1, 1), (1, 1), 'SAME',
        dimension_numbers=('NCHW', 'OIHW', 'NCHW'))
    z = z + pw_b.reshape(1, -1, 1, 1)
    m = z.mean(axis=(0, 2, 3), keepdims=True)
    v = z.var(axis=(0, 2, 3), keepdims=True)
    z = (z - m) / jnp.sqrt(v + EPS) * g_pw.reshape(1, -1, 1, 1) + b_pw.reshape(1, -1, 1, 1)
    return jnp.maximum(z, 0.0)


if __name__ == "__main__":
    nin, nout = 4, 8
    N, H, W = 2, 16, 16

    key = jax.random.PRNGKey(0)
    ks = jax.random.split(key, 9)
    x = jax.random.normal(ks[0], (N, nin, H, W), jnp.float32)
    dw_w = jax.random.normal(ks[1], (nin, 3, 3), jnp.float32) * 0.3
    dw_b = jax.random.normal(ks[2], (nin,), jnp.float32) * 0.1
    pw_w = jax.random.normal(ks[3], (nout, nin), jnp.float32) * 0.3
    pw_b = jax.random.normal(ks[4], (nout,), jnp.float32) * 0.1
    g_dw = 1.0 + 0.1 * jax.random.normal(ks[5], (nin,), jnp.float32)
    b_dw = 0.1 * jax.random.normal(ks[6], (nin,), jnp.float32)
    g_pw = 1.0 + 0.1 * jax.random.normal(ks[7], (nout,), jnp.float32)
    b_pw = 0.1 * jax.random.normal(ks[8], (nout,), jnp.float32)

    out = depthwise_separable_conv(x, dw_w, dw_b, pw_w, pw_b, g_dw, b_dw, g_pw, b_pw)
    out = jax.block_until_ready(out)

    ref = reference_forward(x, dw_w, dw_b, pw_w, pw_b, g_dw, b_dw, g_pw, b_pw)
    assert out.shape == (N, nout, H, W), out.shape
    assert jnp.allclose(out, ref, rtol=1e-3, atol=1e-3), \
        float(jnp.max(jnp.abs(out - ref)))

    print("KERNEL_OK")
</pallas_src>

<mosaic_0001>
module attributes {stable_mosaic.version = 11 : i64} {
  func.func @_bn1_stats_kernel(%arg0: i32, %arg1: memref<8x256xf32, #tpu.memory_space<vmem>>, %arg2: memref<8x256xf32, #tpu.memory_space<vmem>>, %arg3: memref<8x9xf32, #tpu.memory_space<vmem>>, %arg4: memref<8x1xf32, #tpu.memory_space<vmem>>, %arg5: memref<8x2xf32, #tpu.memory_space<vmem>>, %arg6: memref<8x2xf32, #tpu.memory_space<vmem>>) attributes {dimension_semantics = [#tpu.dimension_semantics<arbitrary>], iteration_bounds = array<i64: 1>, scalar_prefetch = 0 : i64, scratch_operands = 1 : i64, tpu.core_type = #tpu.core_type<tc>, window_params = [{transform_indices = @transform_0, window_bounds = array<i64: 8, 256>}, {pipeline_mode = #tpu.pipeline_mode<synchronous>, transform_indices = @transform_1, window_bounds = array<i64: 8, 256>}, {pipeline_mode = #tpu.pipeline_mode<synchronous>, transform_indices = @transform_2, window_bounds = array<i64: 8, 9>}, {pipeline_mode = #tpu.pipeline_mode<synchronous>, transform_indices = @transform_3, window_bounds = array<i64: 8, 1>}, {pipeline_mode = #tpu.pipeline_mode<synchronous>, transform_indices = @transform_4, window_bounds = array<i64: 8, 2>}]} {
    %c0_i32 = arith.constant 0 : i32
    %0 = arith.cmpi eq, %arg0, %c0_i32 : i32
    %1 = arith.extui %0 : i1 to i32
    %c0_i32_0 = arith.constant 0 : i32
    %2 = arith.cmpi ne, %1, %c0_i32_0 : i32
    scf.if %2 {
      %cst_18 = arith.constant 0.000000e+00 : f32
      %90 = vector.broadcast %cst_18 : f32 to vector<8x2xf32>
      %c0_19 = arith.constant 0 : index
      %c0_20 = arith.constant 0 : index
      %91 = vector.load %arg6[%c0_19, %c0_20] : memref<8x2xf32, #tpu.memory_space<vmem>>, vector<8x2xf32>
      tpu.vector_store %arg6[%c0_19, %c0_20], %90 {strides = array<i32>} : memref<8x2xf32, #tpu.memory_space<vmem>>, vector<8x2xf32>,
    } else {
    }
    %c0 = arith.constant 0 : index
    %c0_1 = arith.constant 0 : index
    %3 = vector.load %arg1[%c0, %c0_1] : memref<8x256xf32, #tpu.memory_space<vmem>>, vector<8x256xf32>
    %c0_2 = arith.constant 0 : index
    %c0_3 = arith.constant 0 : index
    %4 = vector.load %arg2[%c0_2, %c0_3] : memref<8x256xf32, #tpu.memory_space<vmem>>, vector<8x256xf32>
    %c0_4 = arith.constant 0 : index
    %c0_5 = arith.constant 0 : index
    %5 = vector.load %arg3[%c0_4, %c0_5] : memref<8x9xf32, #tpu.memory_space<vmem>>, vector<8x9xf32>
    %c0_6 = arith.constant 0 : index
    %c0_7 = arith.constant 0 : index
    %6 = vector.load %arg4[%c0_6, %c0_7] : memref<8x1xf32, #tpu.memory_space<vmem>>, vector<8x1xf32>
    %7 = vector.extract_strided_slice %5 {offsets = [0, 4], sizes = [8, 1], strides = [1, 1]} : vector<8x9xf32> to vector<8x1xf32>
    %8 = vector.broadcast %7 : vector<8x1xf32> to vector<8x256xf32>
    %9 = arith.mulf %8, %3 : vector<8x256xf32>
    %10 = vector.broadcast %6 : vector<8x1xf32> to vector<8x256xf32>
    %11 = arith.addf %9, %10 : vector<8x256xf32>
    %c17_i32 = arith.constant 17 : i32
    %12 = tpu.dynamic_rotate %3 by %c17_i32 dim 1 : vector<8x256xf32>, i32 -> vector<8x256xf32>
    %13 = vector.extract_strided_slice %5 {offsets = [0, 0], sizes = [8, 1], strides = [1, 1]} : vector<8x9xf32> to vector<8x1xf32>
    %14 = vector.extract_strided_slice %4 {offsets = [0, 0], sizes = [1, 256], strides = [1, 1]} : vector<8x256xf32> to vector<1x256xf32>
    %15 = vector.broadcast %14 : vector<1x256xf32> to vector<8x256xf32>
    %16 = arith.mulf %12, %15 : vector<8x256xf32>
    %17 = vector.broadcast %13 : vector<8x1xf32> to vector<8x256xf32>
    %18 = arith.mulf %17, %16 : vector<8x256xf32>
    %19 = arith.addf %11, %18 : vector<8x256xf32>
    %c16_i32 = arith.constant 16 : i32
    %20 = tpu.dynamic_rotate %3 by %c16_i32 dim 1 : vector<8x256xf32>, i32 -> vector<8x256xf32>
    %21 = vector.extract_strided_slice %5 {offsets = [0, 1], sizes = [8, 1], strides = [1, 1]} : vector<8x9xf32> to vector<8x1xf32>
    %22 = vector.extract_strided_slice %4 {offsets = [1, 0], sizes = [1, 256], strides = [1, 1]} : vector<8x256xf32> to vector<1x256xf32>
    %23 = vector.broadcast %22 : vector<1x256xf32> to vector<8x256xf32>
    %24 = arith.mulf %20, %23 : vector<8x256xf32>
    %25 = vector.broadcast %21 : vector<8x1xf32> to vector<8x256xf32>
    %26 = arith.mulf %25, %24 : vector<8x256xf32>
    %27 = arith.addf %19, %26 : vector<8x256xf32>
    %c15_i32 = arith.constant 15 : i32
    %28 = tpu.dynamic_rotate %3 by %c15_i32 dim 1 : vector<8x256xf32>, i32 -> vector<8x256xf32>
    %29 = vector.extract_strided_slice %5 {offsets = [0, 2], sizes = [8, 1], strides = [1, 1]} : vector<8x9xf32> to vector<8x1xf32>
    %30 = vector.extract_strided_slice %4 {offsets = [2, 0], sizes = [1, 256], strides = [1, 1]} : vector<8x256xf32> to vector<1x256xf32>
    %31 = vector.broadcast %30 : vector<1x256xf32> to vector<8x256xf32>
    %32 = arith.mulf %28, %31 : vector<8x256xf32>
    %33 = vector.broadcast %29 : vector<8x1xf32> to vector<8x256xf32>
    %34 = arith.mulf %33, %32 : vector<8x256xf32>
    %35 = arith.addf %27, %34 : vector<8x256xf32>
    %c1_i32 = arith.constant 1 : i32
    %36 = tpu.dynamic_rotate %3 by %c1_i32 dim 1 : vector<8x256xf32>, i32 -> vector<8x256xf32>
    %37 = vector.extract_strided_slice %5 {offsets = [0, 3], sizes = [8, 1], strides = [1, 1]} : vector<8x9xf32> to vector<8x1xf32>
    %38 = vector.extract_strided_slice %4 {offsets = [3, 0], sizes = [1, 256], strides = [1, 1]} : vector<8x256xf32> to vector<1x256xf32>
    %39 = vector.broadcast %38 : vector<1x256xf32> to vector<8x256xf32>
    %40 = arith.mulf %36, %39 : vector<8x256xf32>
    %41 = vector.broadcast %37 : vector<8x1xf32> to vector<8x256xf32>
    %42 = arith.mulf %41, %40 : vector<8x256xf32>
    %43 = arith.addf %35, %42 : vector<8x256xf32>
    %c255_i32 = arith.constant 255 : i32
    %44 = tpu.dynamic_rotate %3 by %c255_i32 dim 1 : vector<8x256xf32>, i32 -> vector<8x256xf32>
    %45 = vector.extract_strided_slice %5 {offsets = [0, 5], sizes = [8, 1], strides = [1, 1]} : vector<8x9xf32> to vector<8x1xf32>
    %46 = vector.extract_strided_slice %4 {offsets = [4, 0], sizes = [1, 256], strides = [1, 1]} : vector<8x256xf32> to vector<1x256xf32>
    %47 = vector.broadcast %46 : vector<1x256xf32> to vector<8x256xf32>
    %48 = arith.mulf %44, %47 : vector<8x256xf32>
    %49 = vector.broadcast %45 : vector<8x1xf32> to vector<8x256xf32>
    %50 = arith.mulf %49, %48 : vector<8x256xf32>
    %51 = arith.addf %43, %50 : vector<8x256xf32>
    %c241_i32 = arith.constant 241 : i32
    %52 = tpu.dynamic_rotate %3 by %c241_i32 dim 1 : vector<8x256xf32>, i32 -> vector<8x256xf32>
    %53 = vector.extract_strided_slice %5 {offsets = [0, 6], sizes = [8, 1], strides = [1, 1]} : vector<8x9xf32> to vector<8x1xf32>
    %54 = vector.extract_strided_slice %4 {offsets = [5, 0], sizes = [1, 256], strides = [1, 1]} : vector<8x256xf32> to vector<1x256xf32>
    %55 = vector.broadcast %54 : vector<1x256xf32> to vector<8x256xf32>
    %56 = arith.mulf %52, %55 : vector<8x256xf32>
    %57 = vector.broadcast %53 : vector<8x1xf32> to vector<8x256xf32>
    %58 = arith.mulf %57, %56 : vector<8x256xf32>
    %59 = arith.addf %51, %58 : vector<8x256xf32>
    %c240_i32 = arith.constant 240 : i32
    %60 = tpu.dynamic_rotate %3 by %c240_i32 dim 1 : vector<8x256xf32>, i32 -> vector<8x256xf32>
    %61 = vector.extract_strided_slice %5 {offsets = [0, 7], sizes = [8, 1], strides = [1, 1]} : vector<8x9xf32> to vector<8x1xf32>
    %62 = vector.extract_strided_slice %4 {offsets = [6, 0], sizes = [1, 256], strides = [1, 1]} : vector<8x256xf32> to vector<1x256xf32>
    %63 = vector.broadcast %62 : vector<1x256xf32> to vector<8x256xf32>
    %64 = arith.mulf %60, %63 : vector<8x256xf32>
    %65 = vector.broadcast %61 : vector<8x1xf32> to vector<8x256xf32>
    %66 = arith.mulf %65, %64 : vector<8x256xf32>
    %67 = arith.addf %59, %66 : vector<8x256xf32>
    %c239_i32 = arith.constant 239 : i32
    %68 = tpu.dynamic_rotate %3 by %c239_i32 dim 1 : vector<8x256xf32>, i32 -> vector<8x256xf32>
    %69 = vector.extract_strided_slice %5 {offsets = [0, 8], sizes = [8, 1], strides = [1, 1]} : vector<8x9xf32> to vector<8x1xf32>
    %70 = vector.extract_strided_slice %4 {offsets = [7, 0], sizes = [1, 256], strides = [1, 1]} : vector<8x256xf32> to vector<1x256xf32>
    %71 = vector.broadcast %70 : vector<1x256xf32> to vector<8x256xf32>
    %72 = arith.mulf %68, %71 : vector<8x256xf32>
    %73 = vector.broadcast %69 : vector<8x1xf32> to vector<8x256xf32>
    %74 = arith.mulf %73, %72 : vector<8x256xf32>
    %75 = arith.addf %67, %74 : vector<8x256xf32>
    %c0_8 = arith.constant 0 : index
    %c0_9 = arith.constant 0 : index
    %76 = vector.load %arg6[%c0_8, %c0_9] : memref<8x2xf32, #tpu.memory_space<vmem>>, vector<8x1xf32>
    %cst = arith.constant dense<0.000000e+00> : vector<8xf32>
    %77 = vector.multi_reduction <add>, %75, %cst [1] : vector<8x256xf32> to vector<8xf32>
    %78 = vector.shape_cast %77 : vector<8xf32> to vector<8x1xf32>
    %79 = arith.addf %76, %78 : vector<8x1xf32>
    %c0_10 = arith.constant 0 : index
    %c0_11 = arith.constant 0 : index
    %80 = vector.load %arg6[%c0_10, %c0_11] : memref<8x2xf32, #tpu.memory_space<vmem>>, vector<8x1xf32>
    tpu.vector_store %arg6[%c0_10, %c0_11], %79 {strides = array<i32>} : memref<8x2xf32, #tpu.memory_space<vmem>>, vector<8x1xf32>,
    %c0_12 = arith.constant 0 : index
    %c1 = arith.constant 1 : index
    %81 = vector.load %arg6[%c0_12, %c1] : memref<8x2xf32, #tpu.memory_space<vmem>>, vector<8x1xf32>
    %82 = arith.mulf %75, %75 : vector<8x256xf32>
    %cst_13 = arith.constant dense<0.000000e+00> : vector<8xf32>
    %83 = vector.multi_reduction <add>, %82, %cst_13 [1] : vector<8x256xf32> to vector<8xf32>
    %84 = vector.shape_cast %83 : vector<8xf32> to vector<8x1xf32>
    %85 = arith.addf %81, %84 : vector<8x1xf32>
    %c0_14 = arith.constant 0 : index
    %c1_15 = arith.constant 1 : index
    %86 = vector.load %arg6[%c0_14, %c1_15] : memref<8x2xf32, #tpu.memory_space<vmem>>, vector<8x1xf32>
    tpu.vector_store %arg6[%c0_14, %c1_15], %85 {strides = array<i32>} : memref<8x2xf32, #tpu.memory_space<vmem>>, vector<8x1xf32>,
    %c0_i32_16 = arith.constant 0 : i32
    %87 = arith.cmpi eq, %arg0, %c0_i32_16 : i32
    %88 = arith.extui %87 : i1 to i32
    %c0_i32_17 = arith.constant 0 : i32
    %89 = arith.cmpi ne, %88, %c0_i32_17 : i32
    scf.if %89 {
      %c0_18 = arith.constant 0 : index
      %c0_19 = arith.constant 0 : index
      %90 = vector.load %arg6[%c0_18, %c0_19] : memref<8x2xf32, #tpu.memory_space<vmem>>, vector<8x2xf32>
      %c0_20 = arith.constant 0 : index
      %c0_21 = arith.constant 0 : index
      %91 = vector.load %arg5[%c0_20, %c0_21] : memref<8x2xf32, #tpu.memory_space<vmem>>, vector<8x2xf32>
      tpu.vector_store %arg5[%c0_20, %c0_21], %90 {strides = array<i32>} : memref<8x2xf32, #tpu.memory_space<vmem>>, vector<8x2xf32>,
    } else {
    }
    return
  }
  func.func @transform_0(%arg0: i32) -> (i32, i32) {
    %c0_i32 = arith.constant 0 : i32
    %c0_i32_0 = arith.constant 0 : i32
    return %arg0, %c0_i32 : i32, i32
  }
  func.func @transform_1(%arg0: i32) -> (i32, i32) {
    %c0_i32 = arith.constant 0 : i32
    %c0_i32_0 = arith.constant 0 : i32
    %c0_i32_1 = arith.constant 0 : i32
    return %c0_i32, %c0_i32_0 : i32, i32
  }
  func.func @transform_2(%arg0: i32) -> (i32, i32) {
    %c0_i32 = arith.constant 0 : i32
    %c0_i32_0 = arith.constant 0 : i32
    %c0_i32_1 = arith.constant 0 : i32
    return %c0_i32, %c0_i32_0 : i32, i32
  }
  func.func @transform_3(%arg0: i32) -> (i32, i32) {
    %c0_i32 = arith.constant 0 : i32
    %c0_i32_0 = arith.constant 0 : i32
    %c0_i32_1 = arith.constant 0 : i32
    return %c0_i32, %c0_i32_0 : i32, i32
  }
  func.func @transform_4(%arg0: i32) -> (i32, i32) {
    %c0_i32 = arith.constant 0 : i32
    %c0_i32_0 = arith.constant 0 : i32
    %c0_i32_1 = arith.constant 0 : i32
    return %c0_i32, %c0_i32_0 : i32, i32
  }
}

module attributes {stable_mosaic.version = 11 : i64} {
  func.func @_bn2_stats_kernel(%arg0: i32, %arg1: memref<8x256xf32, #tpu.memory_space<vmem>>, %arg2: memref<8x256xf32, #tpu.memory_space<vmem>>, %arg3: memref<8x9xf32, #tpu.memory_space<vmem>>, %arg4: memref<8x1xf32, #tpu.memory_space<vmem>>, %arg5: memref<8x1xf32, #tpu.memory_space<vmem>>, %arg6: memref<8x1xf32, #tpu.memory_space<vmem>>, %arg7: memref<8x4xf32, #tpu.memory_space<vmem>>, %arg8: memref<8x1xf32, #tpu.memory_space<vmem>>, %arg9: memref<16x2xf32, #tpu.memory_space<vmem>>, %arg10: memref<16x2xf32, #tpu.memory_space<vmem>>) attributes {dimension_semantics = [#tpu.dimension_semantics<arbitrary>], iteration_bounds = array<i64: 1>, scalar_prefetch = 0 : i64, scratch_operands = 1 : i64, tpu.core_type = #tpu.core_type<tc>, window_params = [{transform_indices = @transform_0, window_bounds = array<i64: 8, 256>}, {pipeline_mode = #tpu.pipeline_mode<synchronous>, transform_indices = @transform_1, window_bounds = array<i64: 8, 256>}, {pipeline_mode = #tpu.pipeline_mode<synchronous>, transform_indices = @transform_2, window_bounds = array<i64: 8, 9>}, {pipeline_mode = #tpu.pipeline_mode<synchronous>, transform_indices = @transform_3, window_bounds = array<i64: 8, 1>}, {pipeline_mode = #tpu.pipeline_mode<synchronous>, transform_indices = @transform_4, window_bounds = array<i64: 8, 1>}, {pipeline_mode = #tpu.pipeline_mode<synchronous>, transform_indices = @transform_5, window_bounds = array<i64: 8, 1>}, {pipeline_mode = #tpu.pipeline_mode<synchronous>, transform_indices = @transform_6, window_bounds = array<i64: 8, 4>}, {pipeline_mode = #tpu.pipeline_mode<synchronous>, transform_indices = @transform_7, window_bounds = array<i64: 8, 1>}, {pipeline_mode = #tpu.pipeline_mode<synchronous>, transform_indices = @transform_8, window_bounds = array<i64: 16, 2>}]} {
    %c0_i32 = arith.constant 0 : i32
    %0 = arith.cmpi eq, %arg0, %c0_i32 : i32
    %1 = arith.extui %0 : i1 to i32
    %c0_i32_0 = arith.constant 0 : i32
    %2 = arith.cmpi ne, %1, %c0_i32_0 : i32
    scf.if %2 {
      %cst_36 = arith.constant 0.000000e+00 : f32
      %163 = vector.broadcast %cst_36 : f32 to vector<16x2xf32>
      %c0_37 = arith.constant 0 : index
      %c0_38 = arith.constant 0 : index
      %164 = vector.load %arg10[%c0_37, %c0_38] : memref<16x2xf32, #tpu.memory_space<vmem>>, vector<16x2xf32>
      tpu.vector_store %arg10[%c0_37, %c0_38], %163 {strides = array<i32>} : memref<16x2xf32, #tpu.memory_space<vmem>>, vector<16x2xf32>,
    } else {
    }
    %c0 = arith.constant 0 : index
    %c0_1 = arith.constant 0 : index
    %3 = vector.load %arg1[%c0, %c0_1] : memref<8x256xf32, #tpu.memory_space<vmem>>, vector<8x256xf32>
    %c0_2 = arith.constant 0 : index
    %c0_3 = arith.constant 0 : index
    %4 = vector.load %arg2[%c0_2, %c0_3] : memref<8x256xf32, #tpu.memory_space<vmem>>, vector<8x256xf32>
    %c0_4 = arith.constant 0 : index
    %c0_5 = arith.constant 0 : index
    %5 = vector.load %arg3[%c0_4, %c0_5] : memref<8x9xf32, #tpu.memory_space<vmem>>, vector<8x9xf32>
    %c0_6 = arith.constant 0 : index
    %c0_7 = arith.constant 0 : index
    %6 = vector.load %arg4[%c0_6, %c0_7] : memref<8x1xf32, #tpu.memory_space<vmem>>, vector<8x1xf32>
    %7 = vector.extract_strided_slice %5 {offsets = [0, 4], sizes = [8, 1], strides = [1, 1]} : vector<8x9xf32> to vector<8x1xf32>
    %8 = vector.broadcast %7 : vector<8x1xf32> to vector<8x256xf32>
    %9 = arith.mulf %8, %3 : vector<8x256xf32>
    %10 = vector.broadcast %6 : vector<8x1xf32> to vector<8x256xf32>
    %11 = arith.addf %9, %10 : vector<8x256xf32>
    %c17_i32 = arith.constant 17 : i32
    %12 = tpu.dynamic_rotate %3 by %c17_i32 dim 1 : vector<8x256xf32>, i32 -> vector<8x256xf32>
    %13 = vector.extract_strided_slice %5 {offsets = [0, 0], sizes = [8, 1], strides = [1, 1]} : vector<8x9xf32> to vector<8x1xf32>
    %14 = vector.extract_strided_slice %4 {offsets = [0, 0], sizes = [1, 256], strides = [1, 1]} : vector<8x256xf32> to vector<1x256xf32>
    %15 = vector.broadcast %14 : vector<1x256xf32> to vector<8x256xf32>
    %16 = arith.mulf %12, %15 : vector<8x256xf32>
    %17 = vector.broadcast %13 : vector<8x1xf32> to vector<8x256xf32>
    %18 = arith.mulf %17, %16 : vector<8x256xf32>
    %19 = arith.addf %11, %18 : vector<8x256xf32>
    %c16_i32 = arith.constant 16 : i32
    %20 = tpu.dynamic_rotate %3 by %c16_i32 dim 1 : vector<8x256xf32>, i32 -> vector<8x256xf32>
    %21 = vector.extract_strided_slice %5 {offsets = [0, 1], sizes = [8, 1], strides = [1, 1]} : vector<8x9xf32> to vector<8x1xf32>
    %22 = vector.extract_strided_slice %4 {offsets = [1, 0], sizes = [1, 256], strides = [1, 1]} : vector<8x256xf32> to vector<1x256xf32>
    %23 = vector.broadcast %22 : vector<1x256xf32> to vector<8x256xf32>
    %24 = arith.mulf %20, %23 : vector<8x256xf32>
    %25 = vector.broadcast %21 : vector<8x1xf32> to vector<8x256xf32>
    %26 = arith.mulf %25, %24 : vector<8x256xf32>
    %27 = arith.addf %19, %26 : vector<8x256xf32>
    %c15_i32 = arith.constant 15 : i32
    %28 = tpu.dynamic_rotate %3 by %c15_i32 dim 1 : vector<8x256xf32>, i32 -> vector<8x256xf32>
    %29 = vector.extract_strided_slice %5 {offsets = [0, 2], sizes = [8, 1], strides = [1, 1]} : vector<8x9xf32> to vector<8x1xf32>
    %30 = vector.extract_strided_slice %4 {offsets = [2, 0], sizes = [1, 256], strides = [1, 1]} : vector<8x256xf32> to vector<1x256xf32>
    %31 = vector.broadcast %30 : vector<1x256xf32> to vector<8x256xf32>
    %32 = arith.mulf %28, %31 : vector<8x256xf32>
    %33 = vector.broadcast %29 : vector<8x1xf32> to vector<8x256xf32>
    %34 = arith.mulf %33, %32 : vector<8x256xf32>
    %35 = arith.addf %27, %34 : vector<8x256xf32>
    %c1_i32 = arith.constant 1 : i32
    %36 = tpu.dynamic_rotate %3 by %c1_i32 dim 1 : vector<8x256xf32>, i32 -> vector<8x256xf32>
    %37 = vector.extract_strided_slice %5 {offsets = [0, 3], sizes = [8, 1], strides = [1, 1]} : vector<8x9xf32> to vector<8x1xf32>
    %38 = vector.extract_strided_slice %4 {offsets = [3, 0], sizes = [1, 256], strides = [1, 1]} : vector<8x256xf32> to vector<1x256xf32>
    %39 = vector.broadcast %38 : vector<1x256xf32> to vector<8x256xf32>
    %40 = arith.mulf %36, %39 : vector<8x256xf32>
    %41 = vector.broadcast %37 : vector<8x1xf32> to vector<8x256xf32>
    %42 = arith.mulf %41, %40 : vector<8x256xf32>
    %43 = arith.addf %35, %42 : vector<8x256xf32>
    %c255_i32 = arith.constant 255 : i32
    %44 = tpu.dynamic_rotate %3 by %c255_i32 dim 1 : vector<8x256xf32>, i32 -> vector<8x256xf32>
    %45 = vector.extract_strided_slice %5 {offsets = [0, 5], sizes = [8, 1], strides = [1, 1]} : vector<8x9xf32> to vector<8x1xf32>
    %46 = vector.extract_strided_slice %4 {offsets = [4, 0], sizes = [1, 256], strides = [1, 1]} : vector<8x256xf32> to vector<1x256xf32>
    %47 = vector.broadcast %46 : vector<1x256xf32> to vector<8x256xf32>
    %48 = arith.mulf %44, %47 : vector<8x256xf32>
    %49 = vector.broadcast %45 : vector<8x1xf32> to vector<8x256xf32>
    %50 = arith.mulf %49, %48 : vector<8x256xf32>
    %51 = arith.addf %43, %50 : vector<8x256xf32>
    %c241_i32 = arith.constant 241 : i32
    %52 = tpu.dynamic_rotate %3 by %c241_i32 dim 1 : vector<8x256xf32>, i32 -> vector<8x256xf32>
    %53 = vector.extract_strided_slice %5 {offsets = [0, 6], sizes = [8, 1], strides = [1, 1]} : vector<8x9xf32> to vector<8x1xf32>
    %54 = vector.extract_strided_slice %4 {offsets = [5, 0], sizes = [1, 256], strides = [1, 1]} : vector<8x256xf32> to vector<1x256xf32>
    %55 = vector.broadcast %54 : vector<1x256xf32> to vector<8x256xf32>
    %56 = arith.mulf %52, %55 : vector<8x256xf32>
    %57 = vector.broadcast %53 : vector<8x1xf32> to vector<8x256xf32>
    %58 = arith.mulf %57, %56 : vector<8x256xf32>
    %59 = arith.addf %51, %58 : vector<8x256xf32>
    %c240_i32 = arith.constant 240 : i32
    %60 = tpu.dynamic_rotate %3 by %c240_i32 dim 1 : vector<8x256xf32>, i32 -> vector<8x256xf32>
    %61 = vector.extract_strided_slice %5 {offsets = [0, 7], sizes = [8, 1], strides = [1, 1]} : vector<8x9xf32> to vector<8x1xf32>
    %62 = vector.extract_strided_slice %4 {offsets = [6, 0], sizes = [1, 256], strides = [1, 1]} : vector<8x256xf32> to vector<1x256xf32>
    %63 = vector.broadcast %62 : vector<1x256xf32> to vector<8x256xf32>
    %64 = arith.mulf %60, %63 : vector<8x256xf32>
    %65 = vector.broadcast %61 : vector<8x1xf32> to vector<8x256xf32>
    %66 = arith.mulf %65, %64 : vector<8x256xf32>
    %67 = arith.addf %59, %66 : vector<8x256xf32>
    %c239_i32 = arith.constant 239 : i32
    %68 = tpu.dynamic_rotate %3 by %c239_i32 dim 1 : vector<8x256xf32>, i32 -> vector<8x256xf32>
    %69 = vector.extract_strided_slice %5 {offsets = [0, 8], sizes = [8, 1], strides = [1, 1]} : vector<8x9xf32> to vector<8x1xf32>
    %70 = vector.extract_strided_slice %4 {offsets = [7, 0], sizes = [1, 256], strides = [1, 1]} : vector<8x256xf32> to vector<1x256xf32>
    %71 = vector.broadcast %70 : vector<1x256xf32> to vector<8x256xf32>
    %72 = arith.mulf %68, %71 : vector<8x256xf32>
    %73 = vector.broadcast %69 : vector<8x1xf32> to vector<8x256xf32>
    %74 = arith.mulf %73, %72 : vector<8x256xf32>
    %75 = arith.addf %67, %74 : vector<8x256xf32>
    %c0_8 = arith.constant 0 : index
    %c0_9 = arith.constant 0 : index
    %76 = vector.load %arg5[%c0_8, %c0_9] : memref<8x1xf32, #tpu.memory_space<vmem>>, vector<8x1xf32>
    %77 = vector.broadcast %76 : vector<8x1xf32> to vector<8x256xf32>
    %78 = arith.mulf %75, %77 : vector<8x256xf32>
    %c0_10 = arith.constant 0 : index
    %c0_11 = arith.constant 0 : index
    %79 = vector.load %arg6[%c0_10, %c0_11] : memref<8x1xf32, #tpu.memory_space<vmem>>, vector<8x1xf32>
    %80 = vector.broadcast %79 : vector<8x1xf32> to vector<8x256xf32>
    %81 = arith.addf %78, %80 : vector<8x256xf32>
    %cst = arith.constant 0.000000e+00 : f32
    %82 = vector.broadcast %cst : f32 to vector<8x256xf32>
    %83 = arith.maximumf %81, %82 : vector<8x256xf32>
    %c0_12 = arith.constant 0 : index
    %c0_13 = arith.constant 0 : index
    %84 = vector.load %arg7[%c0_12, %c0_13] : memref<8x4xf32, #tpu.memory_space<vmem>>, vector<8x4xf32>
    %c0_14 = arith.constant 0 : index
    %c0_15 = arith.constant 0 : index
    %85 = vector.load %arg8[%c0_14, %c0_15] : memref<8x1xf32, #tpu.memory_space<vmem>>, vector<8x1xf32>
    %86 = vector.extract_strided_slice %83 {offsets = [0, 0], sizes = [4, 256], strides = [1, 1]} : vector<8x256xf32> to vector<4x256xf32>
    %87 = vector.extract_strided_slice %84 {offsets = [0, 0], sizes = [8, 1], strides = [1, 1]} : vector<8x4xf32> to vector<8x1xf32>
    %88 = vector.extract_strided_slice %86 {offsets = [0, 0], sizes = [1, 256], strides = [1, 1]} : vector<4x256xf32> to vector<1x256xf32>
    %89 = vector.broadcast %87 : vector<8x1xf32> to vector<8x256xf32>
    %90 = vector.broadcast %88 : vector<1x256xf32> to vector<8x256xf32>
    %91 = arith.mulf %89, %90 : vector<8x256xf32>
    %92 = vector.broadcast %85 : vector<8x1xf32> to vector<8x256xf32>
    %93 = arith.addf %92, %91 : vector<8x256xf32>
    %94 = vector.extract_strided_slice %84 {offsets = [0, 1], sizes = [8, 1], strides = [1, 1]} : vector<8x4xf32> to vector<8x1xf32>
    %95 = vector.extract_strided_slice %86 {offsets = [1, 0], sizes = [1, 256], strides = [1, 1]} : vector<4x256xf32> to vector<1x256xf32>
    %96 = vector.broadcast %94 : vector<8x1xf32> to vector<8x256xf32>
    %97 = vector.broadcast %95 : vector<1x256xf32> to vector<8x256xf32>
    %98 = arith.mulf %96, %97 : vector<8x256xf32>
    %99 = arith.addf %93, %98 : vector<8x256xf32>
    %100 = vector.extract_strided_slice %84 {offsets = [0, 2], sizes = [8, 1], strides = [1, 1]} : vector<8x4xf32> to vector<8x1xf32>
    %101 = vector.extract_strided_slice %86 {offsets = [2, 0], sizes = [1, 256], strides = [1, 1]} : vector<4x256xf32> to vector<1x256xf32>
    %102 = vector.broadcast %100 : vector<8x1xf32> to vector<8x256xf32>
    %103 = vector.broadcast %101 : vector<1x256xf32> to vector<8x256xf32>
    %104 = arith.mulf %102, %103 : vector<8x256xf32>
    %105 = arith.addf %99, %104 : vector<8x256xf32>
    %106 = vector.extract_strided_slice %84 {offsets = [0, 3], sizes = [8, 1], strides = [1, 1]} : vector<8x4xf32> to vector<8x1xf32>
    %107 = vector.extract_strided_slice %86 {offsets = [3, 0], sizes = [1, 256], strides = [1, 1]} : vector<4x256xf32> to vector<1x256xf32>
    %108 = vector.broadcast %106 : vector<8x1xf32> to vector<8x256xf32>
    %109 = vector.broadcast %107 : vector<1x256xf32> to vector<8x256xf32>
    %110 = arith.mulf %108, %109 : vector<8x256xf32>
    %111 = arith.addf %105, %110 : vector<8x256xf32>
    %112 = vector.extract_strided_slice %83 {offsets = [4, 0], sizes = [4, 256], strides = [1, 1]} : vector<8x256xf32> to vector<4x256xf32>
    %113 = vector.extract_strided_slice %84 {offsets = [0, 0], sizes = [8, 1], strides = [1, 1]} : vector<8x4xf32> to vector<8x1xf32>
    %114 = vector.extract_strided_slice %112 {offsets = [0, 0], sizes = [1, 256], strides = [1, 1]} : vector<4x256xf32> to vector<1x256xf32>
    %115 = vector.broadcast %113 : vector<8x1xf32> to vector<8x256xf32>
    %116 = vector.broadcast %114 : vector<1x256xf32> to vector<8x256xf32>
    %117 = arith.mulf %115, %116 : vector<8x256xf32>
    %118 = vector.broadcast %85 : vector<8x1xf32> to vector<8x256xf32>
    %119 = arith.addf %118, %117 : vector<8x256xf32>
    %120 = vector.extract_strided_slice %84 {offsets = [0, 1], sizes = [8, 1], strides = [1, 1]} : vector<8x4xf32> to vector<8x1xf32>
    %121 = vector.extract_strided_slice %112 {offsets = [1, 0], sizes = [1, 256], strides = [1, 1]} : vector<4x256xf32> to vector<1x256xf32>
    %122 = vector.broadcast %120 : vector<8x1xf32> to vector<8x256xf32>
    %123 = vector.broadcast %121 : vector<1x256xf32> to vector<8x256xf32>
    %124 = arith.mulf %122, %123 : vector<8x256xf32>
    %125 = arith.addf %119, %124 : vector<8x256xf32>
    %126 = vector.extract_strided_slice %84 {offsets = [0, 2], sizes = [8, 1], strides = [1, 1]} : vector<8x4xf32> to vector<8x1xf32>
    %127 = vector.extract_strided_slice %112 {offsets = [2, 0], sizes = [1, 256], strides = [1, 1]} : vector<4x256xf32> to vector<1x256xf32>
    %128 = vector.broadcast %126 : vector<8x1xf32> to vector<8x256xf32>
    %129 = vector.broadcast %127 : vector<1x256xf32> to vector<8x256xf32>
    %130 = arith.mulf %128, %129 : vector<8x256xf32>
    %131 = arith.addf %125, %130 : vector<8x256xf32>
    %132 = vector.extract_strided_slice %84 {offsets = [0, 3], sizes = [8, 1], strides = [1, 1]} : vector<8x4xf32> to vector<8x1xf32>
    %133 = vector.extract_strided_slice %112 {offsets = [3, 0], sizes = [1, 256], strides = [1, 1]} : vector<4x256xf32> to vector<1x256xf32>
    %134 = vector.broadcast %132 : vector<8x1xf32> to vector<8x256xf32>
    %135 = vector.broadcast %133 : vector<1x256xf32> to vector<8x256xf32>
    %136 = arith.mulf %134, %135 : vector<8x256xf32>
    %137 = arith.addf %131, %136 : vector<8x256xf32>
    %c0_16 = arith.constant 0 : index
    %c0_17 = arith.constant 0 : index
    %138 = vector.load %arg10[%c0_16, %c0_17] : memref<16x2xf32, #tpu.memory_space<vmem>>, vector<8x1xf32>
    %cst_18 = arith.constant dense<0.000000e+00> : vector<8xf32>
    %139 = vector.multi_reduction <add>, %111, %cst_18 [1] : vector<8x256xf32> to vector<8xf32>
    %140 = vector.shape_cast %139 : vector<8xf32> to vector<8x1xf32>
    %141 = arith.addf %138, %140 : vector<8x1xf32>
    %c0_19 = arith.constant 0 : index
    %c0_20 = arith.constant 0 : index
    %142 = vector.load %arg10[%c0_19, %c0_20] : memref<16x2xf32, #tpu.memory_space<vmem>>, vector<8x1xf32>
    tpu.vector_store %arg10[%c0_19, %c0_20], %141 {strides = array<i32>} : memref<16x2xf32, #tpu.memory_space<vmem>>, vector<8x1xf32>,
    %c0_21 = arith.constant 0 : index
    %c1 = arith.constant 1 : index
    %143 = vector.load %arg10[%c0_21, %c1] : memref<16x2xf32, #tpu.memory_space<vmem>>, vector<8x1xf32>
    %144 = arith.mulf %111, %111 : vector<8x256xf32>
    %cst_22 = arith.constant dense<0.000000e+00> : vector<8xf32>
    %145 = vector.multi_reduction <add>, %144, %cst_22 [1] : vector<8x256xf32> to vector<8xf32>
    %146 = vector.shape_cast %145 : vector<8xf32> to vector<8x1xf32>
    %147 = arith.addf %143, %146 : vector<8x1xf32>
    %c0_23 = arith.constant 0 : index
    %c1_24 = arith.constant 1 : index
    %148 = vector.load %arg10[%c0_23, %c1_24] : memref<16x2xf32, #tpu.memory_space<vmem>>, vector<8x1xf32>
    tpu.vector_store %arg10[%c0_23, %c1_24], %147 {strides = array<i32>} : memref<16x2xf32, #tpu.memory_space<vmem>>, vector<8x1xf32>,
    %c8 = arith.constant 8 : index
    %c0_25 = arith.constant 0 : index
    %149 = vector.load %arg10[%c8, %c0_25] : memref<16x2xf32, #tpu.memory_space<vmem>>, vector<8x1xf32>
    %cst_26 = arith.constant dense<0.000000e+00> : vector<8xf32>
    %150 = vector.multi_reduction <add>, %137, %cst_26 [1] : vector<8x256xf32> to vector<8xf32>
    %151 = vector.shape_cast %150 : vector<8xf32> to vector<8x1xf32>
    %152 = arith.addf %149, %151 : vector<8x1xf32>
    %c8_27 = arith.constant 8 : index
    %c0_28 = arith.constant 0 : index
    %153 = vector.load %arg10[%c8_27, %c0_28] : memref<16x2xf32, #tpu.memory_space<vmem>>, vector<8x1xf32>
    tpu.vector_store %arg10[%c8_27, %c0_28], %152 {strides = array<i32>} : memref<16x2xf32, #tpu.memory_space<vmem>>, vector<8x1xf32>,
    %c8_29 = arith.constant 8 : index
    %c1_30 = arith.constant 1 : index
    %154 = vector.load %arg10[%c8_29, %c1_30] : memref<16x2xf32, #tpu.memory_space<vmem>>, vector<8x1xf32>
    %155 = arith.mulf %137, %137 : vector<8x256xf32>
    %cst_31 = arith.constant dense<0.000000e+00> : vector<8xf32>
    %156 = vector.multi_reduction <add>, %155, %cst_31 [1] : vector<8x256xf32> to vector<8xf32>
    %157 = vector.shape_cast %156 : vector<8xf32> to vector<8x1xf32>
    %158 = arith.addf %154, %157 : vector<8x1xf32>
    %c8_32 = arith.constant 8 : index
    %c1_33 = arith.constant 1 : index
    %159 = vector.load %arg10[%c8_32, %c1_33] : memref<16x2xf32, #tpu.memory_space<vmem>>, vector<8x1xf32>
    tpu.vector_store %arg10[%c8_32, %c1_33], %158 {strides = array<i32>} : memref<16x2xf32, #tpu.memory_space<vmem>>, vector<8x1xf32>,
    %c0_i32_34 = arith.constant 0 : i32
    %160 = arith.cmpi eq, %arg0, %c0_i32_34 : i32
    %161 = arith.extui %160 : i1 to i32
    %c0_i32_35 = arith.constant 0 : i32
    %162 = arith.cmpi ne, %161, %c0_i32_35 : i32
    scf.if %162 {
      %c0_36 = arith.constant 0 : index
      %c0_37 = arith.constant 0 : index
      %163 = vector.load %arg10[%c0_36, %c0_37] : memref<16x2xf32, #tpu.memory_space<vmem>>, vector<16x2xf32>
      %c0_38 = arith.constant 0 : index
      %c0_39 = arith.constant 0 : index
      %164 = vector.load %arg9[%c0_38, %c0_39] : memref<16x2xf32, #tpu.memory_space<vmem>>, vector<16x2xf32>
      tpu.vector_store %arg9[%c0_38, %c0_39], %163 {strides = array<i32>} : memref<16x2xf32, #tpu.memory_space<vmem>>, vector<16x2xf32>,
    } else {
    }
    return
  }
  func.func @transform_0(%arg0: i32) -> (i32, i32) {
    %c0_i32 = arith.constant 0 : i32
    %c0_i32_0 = arith.constant 0 : i32
    return %arg0, %c0_i32 : i32, i32
  }
  func.func @transform_1(%arg0: i32) -> (i32, i32) {
    %c0_i32 = arith.constant 0 : i32
    %c0_i32_0 = arith.constant 0 : i32
    %c0_i32_1 = arith.constant 0 : i32
    return %c0_i32, %c0_i32_0 : i32, i32
  }
  func.func @transform_2(%arg0: i32) -> (i32, i32) {
    %c0_i32 = arith.constant 0 : i32
    %c0_i32_0 = arith.constant 0 : i32
    %c0_i32_1 = arith.constant 0 : i32
    return %c0_i32, %c0_i32_0 : i32, i32
  }
  func.func @transform_3(%arg0: i32) -> (i32, i32) {
    %c0_i32 = arith.constant 0 : i32
    %c0_i32_0 = arith.constant 0 : i32
    %c0_i32_1 = arith.constant 0 : i32
    return %c0_i32, %c0_i32_0 : i32, i32
  }
  func.func @transform_4(%arg0: i32) -> (i32, i32) {
    %c0_i32 = arith.constant 0 : i32
    %c0_i32_0 = arith.constant 0 : i32
    %c0_i32_1 = arith.constant 0 : i32
    return %c0_i32, %c0_i32_0 : i32, i32
  }
  func.func @transform_5(%arg0: i32) -> (i32, i32) {
    %c0_i32 = arith.constant 0 : i32
    %c0_i32_0 = arith.constant 0 : i32
    %c0_i32_1 = arith.constant 0 : i32
    return %c0_i32, %c0_i32_0 : i32, i32
  }
  func.func @transform_6(%arg0: i32) -> (i32, i32) {
    %c0_i32 = arith.constant 0 : i32
    %c0_i32_0 = arith.constant 0 : i32
    %c0_i32_1 = arith.constant 0 : i32
    return %c0_i32, %c0_i32_0 : i32, i32
  }
  func.func @transform_7(%arg0: i32) -> (i32, i32) {
    %c0_i32 = arith.constant 0 : i32
    %c0_i32_0 = arith.constant 0 : i32
    %c0_i32_1 = arith.constant 0 : i32
    return %c0_i32, %c0_i32_0 : i32, i32
  }
  func.func @transform_8(%arg0: i32) -> (i32, i32) {
    %c0_i32 = arith.constant 0 : i32
    %c0_i32_0 = arith.constant 0 : i32
    %c0_i32_1 = arith.constant 0 : i32
    return %c0_i32, %c0_i32_0 : i32, i32
  }
}

module attributes {stable_mosaic.version = 11 : i64} {
  func.func @_fused_fwd_kernel(%arg0: i32, %arg1: memref<8x256xf32, #tpu.memory_space<vmem>>, %arg2: memref<8x256xf32, #tpu.memory_space<vmem>>, %arg3: memref<8x9xf32, #tpu.memory_space<vmem>>, %arg4: memref<8x1xf32, #tpu.memory_space<vmem>>, %arg5: memref<8x1xf32, #tpu.memory_space<vmem>>, %arg6: memref<8x1xf32, #tpu.memory_space<vmem>>, %arg7: memref<8x4xf32, #tpu.memory_space<vmem>>, %arg8: memref<8x1xf32, #tpu.memory_space<vmem>>, %arg9: memref<8x1xf32, #tpu.memory_space<vmem>>, %arg10: memref<8x1xf32, #tpu.memory_space<vmem>>, %arg11: memref<16x256xf32, #tpu.memory_space<vmem>>) attributes {dimension_semantics = [#tpu.dimension_semantics<parallel>], iteration_bounds = array<i64: 1>, scalar_prefetch = 0 : i64, scratch_operands = 0 : i64, tpu.core_type = #tpu.core_type<tc>, window_params = [{transform_indices = @transform_0, window_bounds = array<i64: 8, 256>}, {pipeline_mode = #tpu.pipeline_mode<synchronous>, transform_indices = @transform_1, window_bounds = array<i64: 8, 256>}, {pipeline_mode = #tpu.pipeline_mode<synchronous>, transform_indices = @transform_2, window_bounds = array<i64: 8, 9>}, {pipeline_mode = #tpu.pipeline_mode<synchronous>, transform_indices = @transform_3, window_bounds = array<i64: 8, 1>}, {pipeline_mode = #tpu.pipeline_mode<synchronous>, transform_indices = @transform_4, window_bounds = array<i64: 8, 1>}, {pipeline_mode = #tpu.pipeline_mode<synchronous>, transform_indices = @transform_5, window_bounds = array<i64: 8, 1>}, {pipeline_mode = #tpu.pipeline_mode<synchronous>, transform_indices = @transform_6, window_bounds = array<i64: 8, 4>}, {pipeline_mode = #tpu.pipeline_mode<synchronous>, transform_indices = @transform_7, window_bounds = array<i64: 8, 1>}, {pipeline_mode = #tpu.pipeline_mode<synchronous>, transform_indices = @transform_8, window_bounds = array<i64: 8, 1>}, {pipeline_mode = #tpu.pipeline_mode<synchronous>, transform_indices = @transform_9, window_bounds = array<i64: 8, 1>}, {transform_indices = @transform_10, window_bounds = array<i64: 16, 256>}]} {
    %c0 = arith.constant 0 : index
    %c0_0 = arith.constant 0 : index
    %0 = vector.load %arg1[%c0, %c0_0] : memref<8x256xf32, #tpu.memory_space<vmem>>, vector<8x256xf32>
    %c0_1 = arith.constant 0 : index
    %c0_2 = arith.constant 0 : index
    %1 = vector.load %arg2[%c0_1, %c0_2] : memref<8x256xf32, #tpu.memory_space<vmem>>, vector<8x256xf32>
    %c0_3 = arith.constant 0 : index
    %c0_4 = arith.constant 0 : index
    %2 = vector.load %arg3[%c0_3, %c0_4] : memref<8x9xf32, #tpu.memory_space<vmem>>, vector<8x9xf32>
    %c0_5 = arith.constant 0 : index
    %c0_6 = arith.constant 0 : index
    %3 = vector.load %arg4[%c0_5, %c0_6] : memref<8x1xf32, #tpu.memory_space<vmem>>, vector<8x1xf32>
    %4 = vector.extract_strided_slice %2 {offsets = [0, 4], sizes = [8, 1], strides = [1, 1]} : vector<8x9xf32> to vector<8x1xf32>
    %5 = vector.broadcast %4 : vector<8x1xf32> to vector<8x256xf32>
    %6 = arith.mulf %5, %0 : vector<8x256xf32>
    %7 = vector.broadcast %3 : vector<8x1xf32> to vector<8x256xf32>
    %8 = arith.addf %6, %7 : vector<8x256xf32>
    %c17_i32 = arith.constant 17 : i32
    %9 = tpu.dynamic_rotate %0 by %c17_i32 dim 1 : vector<8x256xf32>, i32 -> vector<8x256xf32>
    %10 = vector.extract_strided_slice %2 {offsets = [0, 0], sizes = [8, 1], strides = [1, 1]} : vector<8x9xf32> to vector<8x1xf32>
    %11 = vector.extract_strided_slice %1 {offsets = [0, 0], sizes = [1, 256], strides = [1, 1]} : vector<8x256xf32> to vector<1x256xf32>
    %12 = vector.broadcast %11 : vector<1x256xf32> to vector<8x256xf32>
    %13 = arith.mulf %9, %12 : vector<8x256xf32>
    %14 = vector.broadcast %10 : vector<8x1xf32> to vector<8x256xf32>
    %15 = arith.mulf %14, %13 : vector<8x256xf32>
    %16 = arith.addf %8, %15 : vector<8x256xf32>
    %c16_i32 = arith.constant 16 : i32
    %17 = tpu.dynamic_rotate %0 by %c16_i32 dim 1 : vector<8x256xf32>, i32 -> vector<8x256xf32>
    %18 = vector.extract_strided_slice %2 {offsets = [0, 1], sizes = [8, 1], strides = [1, 1]} : vector<8x9xf32> to vector<8x1xf32>
    %19 = vector.extract_strided_slice %1 {offsets = [1, 0], sizes = [1, 256], strides = [1, 1]} : vector<8x256xf32> to vector<1x256xf32>
    %20 = vector.broadcast %19 : vector<1x256xf32> to vector<8x256xf32>
    %21 = arith.mulf %17, %20 : vector<8x256xf32>
    %22 = vector.broadcast %18 : vector<8x1xf32> to vector<8x256xf32>
    %23 = arith.mulf %22, %21 : vector<8x256xf32>
    %24 = arith.addf %16, %23 : vector<8x256xf32>
    %c15_i32 = arith.constant 15 : i32
    %25 = tpu.dynamic_rotate %0 by %c15_i32 dim 1 : vector<8x256xf32>, i32 -> vector<8x256xf32>
    %26 = vector.extract_strided_slice %2 {offsets = [0, 2], sizes = [8, 1], strides = [1, 1]} : vector<8x9xf32> to vector<8x1xf32>
    %27 = vector.extract_strided_slice %1 {offsets = [2, 0], sizes = [1, 256], strides = [1, 1]} : vector<8x256xf32> to vector<1x256xf32>
    %28 = vector.broadcast %27 : vector<1x256xf32> to vector<8x256xf32>
    %29 = arith.mulf %25, %28 : vector<8x256xf32>
    %30 = vector.broadcast %26 : vector<8x1xf32> to vector<8x256xf32>
    %31 = arith.mulf %30, %29 : vector<8x256xf32>
    %32 = arith.addf %24, %31 : vector<8x256xf32>
    %c1_i32 = arith.constant 1 : i32
    %33 = tpu.dynamic_rotate %0 by %c1_i32 dim 1 : vector<8x256xf32>, i32 -> vector<8x256xf32>
    %34 = vector.extract_strided_slice %2 {offsets = [0, 3], sizes = [8, 1], strides = [1, 1]} : vector<8x9xf32> to vector<8x1xf32>
    %35 = vector.extract_strided_slice %1 {offsets = [3, 0], sizes = [1, 256], strides = [1, 1]} : vector<8x256xf32> to vector<1x256xf32>
    %36 = vector.broadcast %35 : vector<1x256xf32> to vector<8x256xf32>
    %37 = arith.mulf %33, %36 : vector<8x256xf32>
    %38 = vector.broadcast %34 : vector<8x1xf32> to vector<8x256xf32>
    %39 = arith.mulf %38, %37 : vector<8x256xf32>
    %40 = arith.addf %32, %39 : vector<8x256xf32>
    %c255_i32 = arith.constant 255 : i32
    %41 = tpu.dynamic_rotate %0 by %c255_i32 dim 1 : vector<8x256xf32>, i32 -> vector<8x256xf32>
    %42 = vector.extract_strided_slice %2 {offsets = [0, 5], sizes = [8, 1], strides = [1, 1]} : vector<8x9xf32> to vector<8x1xf32>
    %43 = vector.extract_strided_slice %1 {offsets = [4, 0], sizes = [1, 256], strides = [1, 1]} : vector<8x256xf32> to vector<1x256xf32>
    %44 = vector.broadcast %43 : vector<1x256xf32> to vector<8x256xf32>
    %45 = arith.mulf %41, %44 : vector<8x256xf32>
    %46 = vector.broadcast %42 : vector<8x1xf32> to vector<8x256xf32>
    %47 = arith.mulf %46, %45 : vector<8x256xf32>
    %48 = arith.addf %40, %47 : vector<8x256xf32>
    %c241_i32 = arith.constant 241 : i32
    %49 = tpu.dynamic_rotate %0 by %c241_i32 dim 1 : vector<8x256xf32>, i32 -> vector<8x256xf32>
    %50 = vector.extract_strided_slice %2 {offsets = [0, 6], sizes = [8, 1], strides = [1, 1]} : vector<8x9xf32> to vector<8x1xf32>
    %51 = vector.extract_strided_slice %1 {offsets = [5, 0], sizes = [1, 256], strides = [1, 1]} : vector<8x256xf32> to vector<1x256xf32>
    %52 = vector.broadcast %51 : vector<1x256xf32> to vector<8x256xf32>
    %53 = arith.mulf %49, %52 : vector<8x256xf32>
    %54 = vector.broadcast %50 : vector<8x1xf32> to vector<8x256xf32>
    %55 = arith.mulf %54, %53 : vector<8x256xf32>
    %56 = arith.addf %48, %55 : vector<8x256xf32>
    %c240_i32 = arith.constant 240 : i32
    %57 = tpu.dynamic_rotate %0 by %c240_i32 dim 1 : vector<8x256xf32>, i32 -> vector<8x256xf32>
    %58 = vector.extract_strided_slice %2 {offsets = [0, 7], sizes = [8, 1], strides = [1, 1]} : vector<8x9xf32> to vector<8x1xf32>
    %59 = vector.extract_strided_slice %1 {offsets = [6, 0], sizes = [1, 256], strides = [1, 1]} : vector<8x256xf32> to vector<1x256xf32>
    %60 = vector.broadcast %59 : vector<1x256xf32> to vector<8x256xf32>
    %61 = arith.mulf %57, %60 : vector<8x256xf32>
    %62 = vector.broadcast %58 : vector<8x1xf32> to vector<8x256xf32>
    %63 = arith.mulf %62, %61 : vector<8x256xf32>
    %64 = arith.addf %56, %63 : vector<8x256xf32>
    %c239_i32 = arith.constant 239 : i32
    %65 = tpu.dynamic_rotate %0 by %c239_i32 dim 1 : vector<8x256xf32>, i32 -> vector<8x256xf32>
    %66 = vector.extract_strided_slice %2 {offsets = [0, 8], sizes = [8, 1], strides = [1, 1]} : vector<8x9xf32> to vector<8x1xf32>
    %67 = vector.extract_strided_slice %1 {offsets = [7, 0], sizes = [1, 256], strides = [1, 1]} : vector<8x256xf32> to vector<1x256xf32>
    %68 = vector.broadcast %67 : vector<1x256xf32> to vector<8x256xf32>
    %69 = arith.mulf %65, %68 : vector<8x256xf32>
    %70 = vector.broadcast %66 : vector<8x1xf32> to vector<8x256xf32>
    %71 = arith.mulf %70, %69 : vector<8x256xf32>
    %72 = arith.addf %64, %71 : vector<8x256xf32>
    %c0_7 = arith.constant 0 : index
    %c0_8 = arith.constant 0 : index
    %73 = vector.load %arg5[%c0_7, %c0_8] : memref<8x1xf32, #tpu.memory_space<vmem>>, vector<8x1xf32>
    %74 = vector.broadcast %73 : vector<8x1xf32> to vector<8x256xf32>
    %75 = arith.mulf %72, %74 : vector<8x256xf32>
    %c0_9 = arith.constant 0 : index
    %c0_10 = arith.constant 0 : index
    %76 = vector.load %arg6[%c0_9, %c0_10] : memref<8x1xf32, #tpu.memory_space<vmem>>, vector<8x1xf32>
    %77 = vector.broadcast %76 : vector<8x1xf32> to vector<8x256xf32>
    %78 = arith.addf %75, %77 : vector<8x256xf32>
    %cst = arith.constant 0.000000e+00 : f32
    %79 = vector.broadcast %cst : f32 to vector<8x256xf32>
    %80 = arith.maximumf %78, %79 : vector<8x256xf32>
    %c0_11 = arith.constant 0 : index
    %c0_12 = arith.constant 0 : index
    %81 = vector.load %arg7[%c0_11, %c0_12] : memref<8x4xf32, #tpu.memory_space<vmem>>, vector<8x4xf32>
    %c0_13 = arith.constant 0 : index
    %c0_14 = arith.constant 0 : index
    %82 = vector.load %arg8[%c0_13, %c0_14] : memref<8x1xf32, #tpu.memory_space<vmem>>, vector<8x1xf32>
    %83 = vector.extract_strided_slice %80 {offsets = [0, 0], sizes = [4, 256], strides = [1, 1]} : vector<8x256xf32> to vector<4x256xf32>
    %84 = vector.extract_strided_slice %81 {offsets = [0, 0], sizes = [8, 1], strides = [1, 1]} : vector<8x4xf32> to vector<8x1xf32>
    %85 = vector.extract_strided_slice %83 {offsets = [0, 0], sizes = [1, 256], strides = [1, 1]} : vector<4x256xf32> to vector<1x256xf32>
    %86 = vector.broadcast %84 : vector<8x1xf32> to vector<8x256xf32>
    %87 = vector.broadcast %85 : vector<1x256xf32> to vector<8x256xf32>
    %88 = arith.mulf %86, %87 : vector<8x256xf32>
    %89 = vector.broadcast %82 : vector<8x1xf32> to vector<8x256xf32>
    %90 = arith.addf %89, %88 : vector<8x256xf32>
    %91 = vector.extract_strided_slice %81 {offsets = [0, 1], sizes = [8, 1], strides = [1, 1]} : vector<8x4xf32> to vector<8x1xf32>
    %92 = vector.extract_strided_slice %83 {offsets = [1, 0], sizes = [1, 256], strides = [1, 1]} : vector<4x256xf32> to vector<1x256xf32>
    %93 = vector.broadcast %91 : vector<8x1xf32> to vector<8x256xf32>
    %94 = vector.broadcast %92 : vector<1x256xf32> to vector<8x256xf32>
    %95 = arith.mulf %93, %94 : vector<8x256xf32>
    %96 = arith.addf %90, %95 : vector<8x256xf32>
    %97 = vector.extract_strided_slice %81 {offsets = [0, 2], sizes = [8, 1], strides = [1, 1]} : vector<8x4xf32> to vector<8x1xf32>
    %98 = vector.extract_strided_slice %83 {offsets = [2, 0], sizes = [1, 256], strides = [1, 1]} : vector<4x256xf32> to vector<1x256xf32>
    %99 = vector.broadcast %97 : vector<8x1xf32> to vector<8x256xf32>
    %100 = vector.broadcast %98 : vector<1x256xf32> to vector<8x256xf32>
    %101 = arith.mulf %99, %100 : vector<8x256xf32>
    %102 = arith.addf %96, %101 : vector<8x256xf32>
    %103 = vector.extract_strided_slice %81 {offsets = [0, 3], sizes = [8, 1], strides = [1, 1]} : vector<8x4xf32> to vector<8x1xf32>
    %104 = vector.extract_strided_slice %83 {offsets = [3, 0], sizes = [1, 256], strides = [1, 1]} : vector<4x256xf32> to vector<1x256xf32>
    %105 = vector.broadcast %103 : vector<8x1xf32> to vector<8x256xf32>
    %106 = vector.broadcast %104 : vector<1x256xf32> to vector<8x256xf32>
    %107 = arith.mulf %105, %106 : vector<8x256xf32>
    %108 = arith.addf %102, %107 : vector<8x256xf32>
    %109 = vector.extract_strided_slice %80 {offsets = [4, 0], sizes = [4, 256], strides = [1, 1]} : vector<8x256xf32> to vector<4x256xf32>
    %110 = vector.extract_strided_slice %81 {offsets = [0, 0], sizes = [8, 1], strides = [1, 1]} : vector<8x4xf32> to vector<8x1xf32>
    %111 = vector.extract_strided_slice %109 {offsets = [0, 0], sizes = [1, 256], strides = [1, 1]} : vector<4x256xf32> to vector<1x256xf32>
    %112 = vector.broadcast %110 : vector<8x1xf32> to vector<8x256xf32>
    %113 = vector.broadcast %111 : vector<1x256xf32> to vector<8x256xf32>
    %114 = arith.mulf %112, %113 : vector<8x256xf32>
    %115 = vector.broadcast %82 : vector<8x1xf32> to vector<8x256xf32>
    %116 = arith.addf %115, %114 : vector<8x256xf32>
    %117 = vector.extract_strided_slice %81 {offsets = [0, 1], sizes = [8, 1], strides = [1, 1]} : vector<8x4xf32> to vector<8x1xf32>
    %118 = vector.extract_strided_slice %109 {offsets = [1, 0], sizes = [1, 256], strides = [1, 1]} : vector<4x256xf32> to vector<1x256xf32>
    %119 = vector.broadcast %117 : vector<8x1xf32> to vector<8x256xf32>
    %120 = vector.broadcast %118 : vector<1x256xf32> to vector<8x256xf32>
    %121 = arith.mulf %119, %120 : vector<8x256xf32>
    %122 = arith.addf %116, %121 : vector<8x256xf32>
    %123 = vector.extract_strided_slice %81 {offsets = [0, 2], sizes = [8, 1], strides = [1, 1]} : vector<8x4xf32> to vector<8x1xf32>
    %124 = vector.extract_strided_slice %109 {offsets = [2, 0], sizes = [1, 256], strides = [1, 1]} : vector<4x256xf32> to vector<1x256xf32>
    %125 = vector.broadcast %123 : vector<8x1xf32> to vector<8x256xf32>
    %126 = vector.broadcast %124 : vector<1x256xf32> to vector<8x256xf32>
    %127 = arith.mulf %125, %126 : vector<8x256xf32>
    %128 = arith.addf %122, %127 : vector<8x256xf32>
    %129 = vector.extract_strided_slice %81 {offsets = [0, 3], sizes = [8, 1], strides = [1, 1]} : vector<8x4xf32> to vector<8x1xf32>
    %130 = vector.extract_strided_slice %109 {offsets = [3, 0], sizes = [1, 256], strides = [1, 1]} : vector<4x256xf32> to vector<1x256xf32>
    %131 = vector.broadcast %129 : vector<8x1xf32> to vector<8x256xf32>
    %132 = vector.broadcast %130 : vector<1x256xf32> to vector<8x256xf32>
    %133 = arith.mulf %131, %132 : vector<8x256xf32>
    %134 = arith.addf %128, %133 : vector<8x256xf32>
    %c0_15 = arith.constant 0 : index
    %c0_16 = arith.constant 0 : index
    %135 = vector.load %arg9[%c0_15, %c0_16] : memref<8x1xf32, #tpu.memory_space<vmem>>, vector<8x1xf32>
    %136 = vector.broadcast %135 : vector<8x1xf32> to vector<8x256xf32>
    %137 = arith.mulf %108, %136 : vector<8x256xf32>
    %c0_17 = arith.constant 0 : index
    %c0_18 = arith.constant 0 : index
    %138 = vector.load %arg10[%c0_17, %c0_18] : memref<8x1xf32, #tpu.memory_space<vmem>>, vector<8x1xf32>
    %139 = vector.broadcast %138 : vector<8x1xf32> to vector<8x256xf32>
    %140 = arith.addf %137, %139 : vector<8x256xf32>
    %cst_19 = arith.constant 0.000000e+00 : f32
    %141 = vector.broadcast %cst_19 : f32 to vector<8x256xf32>
    %142 = arith.maximumf %140, %141 : vector<8x256xf32>
    %c0_20 = arith.constant 0 : index
    %c0_21 = arith.constant 0 : index
    %143 = vector.load %arg11[%c0_20, %c0_21] : memref<16x256xf32, #tpu.memory_space<vmem>>, vector<8x256xf32>
    tpu.vector_store %arg11[%c0_20, %c0_21], %142 {strides = array<i32>} : memref<16x256xf32, #tpu.memory_space<vmem>>, vector<8x256xf32>,
    %c0_22 = arith.constant 0 : index
    %c0_23 = arith.constant 0 : index
    %144 = vector.load %arg9[%c0_22, %c0_23] : memref<8x1xf32, #tpu.memory_space<vmem>>, vector<8x1xf32>
    %145 = vector.broadcast %144 : vector<8x1xf32> to vector<8x256xf32>
    %146 = arith.mulf %134, %145 : vector<8x256xf32>
    %c0_24 = arith.constant 0 : index
    %c0_25 = arith.constant 0 : index
    %147 = vector.load %arg10[%c0_24, %c0_25] : memref<8x1xf32, #tpu.memory_space<vmem>>, vector<8x1xf32>
    %148 = vector.broadcast %147 : vector<8x1xf32> to vector<8x256xf32>
    %149 = arith.addf %146, %148 : vector<8x256xf32>
    %cst_26 = arith.constant 0.000000e+00 : f32
    %150 = vector.broadcast %cst_26 : f32 to vector<8x256xf32>
    %151 = arith.maximumf %149, %150 : vector<8x256xf32>
    %c8 = arith.constant 8 : index
    %c0_27 = arith.constant 0 : index
    %152 = vector.load %arg11[%c8, %c0_27] : memref<16x256xf32, #tpu.memory_space<vmem>>, vector<8x256xf32>
    tpu.vector_store %arg11[%c8, %c0_27], %151 {strides = array<i32>} : memref<16x256xf32, #tpu.memory_space<vmem>>, vector<8x256xf32>,
    return
  }
  func.func @transform_0(%arg0: i32) -> (i32, i32) {
    %c0_i32 = arith.constant 0 : i32
    %c0_i32_0 = arith.constant 0 : i32
    return %arg0, %c0_i32 : i32, i32
  }
  func.func @transform_1(%arg0: i32) -> (i32, i32) {
    %c0_i32 = arith.constant 0 : i32
    %c0_i32_0 = arith.constant 0 : i32
    %c0_i32_1 = arith.constant 0 : i32
    return %c0_i32, %c0_i32_0 : i32, i32
  }
  func.func @transform_2(%arg0: i32) -> (i32, i32) {
    %c0_i32 = arith.constant 0 : i32
    %c0_i32_0 = arith.constant 0 : i32
    %c0_i32_1 = arith.constant 0 : i32
    return %c0_i32, %c0_i32_0 : i32, i32
  }
  func.func @transform_3(%arg0: i32) -> (i32, i32) {
    %c0_i32 = arith.constant 0 : i32
    %c0_i32_0 = arith.constant 0 : i32
    %c0_i32_1 = arith.constant 0 : i32
    return %c0_i32, %c0_i32_0 : i32, i32
  }
  func.func @transform_4(%arg0: i32) -> (i32, i32) {
    %c0_i32 = arith.constant 0 : i32
    %c0_i32_0 = arith.constant 0 : i32
    %c0_i32_1 = arith.constant 0 : i32
    return %c0_i32, %c0_i32_0 : i32, i32
  }
  func.func @transform_5(%arg0: i32) -> (i32, i32) {
    %c0_i32 = arith.constant 0 : i32
    %c0_i32_0 = arith.constant 0 : i32
    %c0_i32_1 = arith.constant 0 : i32
    return %c0_i32, %c0_i32_0 : i32, i32
  }
  func.func @transform_6(%arg0: i32) -> (i32, i32) {
    %c0_i32 = arith.constant 0 : i32
    %c0_i32_0 = arith.constant 0 : i32
    %c0_i32_1 = arith.constant 0 : i32
    return %c0_i32, %c0_i32_0 : i32, i32
  }
  func.func @transform_7(%arg0: i32) -> (i32, i32) {
    %c0_i32 = arith.constant 0 : i32
    %c0_i32_0 = arith.constant 0 : i32
    %c0_i32_1 = arith.constant 0 : i32
    return %c0_i32, %c0_i32_0 : i32, i32
  }
  func.func @transform_8(%arg0: i32) -> (i32, i32) {
    %c0_i32 = arith.constant 0 : i32
    %c0_i32_0 = arith.constant 0 : i32
    %c0_i32_1 = arith.constant 0 : i32
    return %c0_i32, %c0_i32_0 : i32, i32
  }
  func.func @transform_9(%arg0: i32) -> (i32, i32) {
    %c0_i32 = arith.constant 0 : i32
    %c0_i32_0 = arith.constant 0 : i32
    %c0_i32_1 = arith.constant 0 : i32
    return %c0_i32, %c0_i32_0 : i32, i32
  }
  func.func @transform_10(%arg0: i32) -> (i32, i32) {
    %c0_i32 = arith.constant 0 : i32
    %c0_i32_0 = arith.constant 0 : i32
    return %arg0, %c0_i32 : i32, i32
  }
}

</mosaic_0001>

<llo_original>
// kernel: depthwise_separable_conv.4
$region0: #{depthwise_separable_conv.4}
  #allocation0 [shape = 'u32[]', space=smem, size = 0x4, offset = 0x4, fixed_abs, tag = 'smem constant byte address 0x4 - core index']
  #allocation1 [shape = 'u32[144,128]{1,0:T(1,128)}', space=vmem, size = 0x12000, scoped, tag = 'internal scratch']
  #allocation2 [shape = 'f32[16,2]{1,0:T(8,128)}', space=vmem, size = 0x2000, scoped, tag = 'scratch operand']
  %s0 = inlined_call_operand.vmem [shape: f32[8,256], index: 0, kind: input, shape index: {}]
  %s1 = inlined_call_operand.vmem [shape: f32[8,256], index: 1, kind: input, shape index: {}]
  %s2 = inlined_call_operand.vmem [shape: f32[8,9], index: 2, kind: input, shape index: {}]
  %s3 = inlined_call_operand.vmem [shape: f32[8,1], index: 3, kind: input, shape index: {}]
  %s4 = inlined_call_operand.vmem [shape: f32[8,1], index: 4, kind: input, shape index: {}]
  %s5 = inlined_call_operand.vmem [shape: f32[8,1], index: 5, kind: input, shape index: {}]
  %s6 = inlined_call_operand.vmem [shape: f32[8,4], index: 6, kind: input, shape index: {}]
  %s7 = inlined_call_operand.vmem [shape: f32[8,1], index: 7, kind: input, shape index: {}]
  %s8 = inlined_call_operand.vmem [shape: f32[16,2], index: 8, kind: output, shape index: {}]
  %s9 = sld [smem:[#allocation0]]
  $region50: #{depthwise_separable_conv.4} parent=0
    _
  %s11 = ssub.s32 1, %s9
  %s12 = scalar_select 0, %s11, %s9
  // Predicated region
  $region2: #{depthwise_separable_conv.4} parent=0 // pred_check
    _
  $region3: #{depthwise_separable_conv.4} parent=0 // pred_check_branch
    %14 = sbr.rel (0) target = $region5
  $region4: #{depthwise_separable_conv.4} parent=0 // pred_region
    _
  $region5: #{depthwise_separable_conv.4} parent=0 // pred_fallthru
    _
  // Predicated region
  $region6: #{depthwise_separable_conv.4} parent=0 // pred_check
    _
  $region7: #{depthwise_separable_conv.4} parent=0 // pred_check_branch
    %16 = sbr.rel (0) target = $region9
  $region8: #{depthwise_separable_conv.4} parent=0 // pred_region
    _
  $region9: #{depthwise_separable_conv.4} parent=0 // pred_fallthru
    _
  // Predicated region
  $region10: #{depthwise_separable_conv.4} parent=0 // pred_check
    _
  $region11: #{depthwise_separable_conv.4} parent=0 // pred_check_branch
    %18 = sbr.rel (0) target = $region13
  $region12: #{depthwise_separable_conv.4} parent=0 // pred_region
    _
  $region13: #{depthwise_separable_conv.4} parent=0 // pred_fallthru
    _
  // Predicated region
  $region14: #{depthwise_separable_conv.4} parent=0 // pred_check
    _
  $region15: #{depthwise_separable_conv.4} parent=0 // pred_check_branch
    %20 = sbr.rel (0) target = $region17
  $region16: #{depthwise_separable_conv.4} parent=0 // pred_region
    _
  $region17: #{depthwise_separable_conv.4} parent=0 // pred_fallthru
    _
  // Predicated region
  $region18: #{depthwise_separable_conv.4} parent=0 // pred_check
    _
  $region19: #{depthwise_separable_conv.4} parent=0 // pred_check_branch
    %22 = sbr.rel (0) target = $region21
  $region20: #{depthwise_separable_conv.4} parent=0 // pred_region
    _
  $region21: #{depthwise_separable_conv.4} parent=0 // pred_fallthru
    _
  // Predicated region
  $region22: #{depthwise_separable_conv.4} parent=0 // pred_check
    _
  $region23: #{depthwise_separable_conv.4} parent=0 // pred_check_branch
    %24 = sbr.rel (0) target = $region25
  $region24: #{depthwise_separable_conv.4} parent=0 // pred_region
    _
  $region25: #{depthwise_separable_conv.4} parent=0 // pred_fallthru
    _
  // Predicated region
  $region26: #{depthwise_separable_conv.4} parent=0 // pred_check
    _
  $region27: #{depthwise_separable_conv.4} parent=0 // pred_check_branch
    %26 = sbr.rel (0) target = $region29
  $region28: #{depthwise_separable_conv.4} parent=0 // pred_region
    _
  $region29: #{depthwise_separable_conv.4} parent=0 // pred_fallthru
    _
  // Predicated region
  $region30: #{depthwise_separable_conv.4} parent=0 // pred_check
    _
  $region31: #{depthwise_separable_conv.4} parent=0 // pred_check_branch
    %28 = sbr.rel (0) target = $region33
  $region32: #{depthwise_separable_conv.4} parent=0 // pred_region
    _
  $region33: #{depthwise_separable_conv.4} parent=0 // pred_fallthru
    _
  %p29 = scmp.eq.s32.totalorder 0, 0
  // Predicated region
  $region34: #{depthwise_separable_conv.4} parent=0 // pred_check
    %p30 = pneg %p29
  $region35: #{depthwise_separable_conv.4} parent=0 // pred_check_branch
    %32 = sbr.rel (%p30) target = $region37
  $region36: #{depthwise_separable_conv.4} parent=0 // pred_region
    %vm33 = vcmask 15360
    %34 = vst.msk [vmem:[#allocation2] sm:$0xff] %vm33, 0.0
    %35 = vst.msk [vmem:[#allocation2 + $0x8] sm:$0xff] %vm33, 0.0
  $region37: #{depthwise_separable_conv.4} parent=0 // pred_fallthru
    _
  %v36 = vld [vmem:[%s0] sm:$0xff]
  %v37 = vld [vmem:[%s0 + $0x8] sm:$0xff]
  %v38 = vld [vmem:[%s1] sm:$0xff]
  %v39 = vld [vmem:[%s1 + $0x8] sm:$0xff]
  %v40 = vld [vmem:[%s2] sm:$0xff]
  %v41 = vld [vmem:[%s3] sm:$0xff]
  %43 = vset.pattern.permute.xlu0 4
  %44 = vperm.xlu0 %43, %v40
  %v45 = vpop.permute.xlu0 %44
  %v47 = vmul.f32 %v45, %v36
  %v48 = vmul.f32 %v45, %v37
  %50 = vset.pattern.permute.xlu0 0
  %51 = vperm.xlu0 %50, %v41
  %v52 = vpop.permute.xlu0 %51
  %v54 = vadd.f32 %v47, %v52
  %v55 = vadd.f32 %v48, %v52
  %56 = vrot.lane.b32.xlu0 %v36, 17
  %v57 = vpop.permute.xlu0 %56
  %58 = vrot.lane.b32.xlu0 %v37, 17
  %v59 = vpop.permute.xlu0 %58
  %v60 = vlaneseq
  %v61 = vand.u32 %v60, 127
  %vm62 = vcmp.lt.s32.totalorder %v61, 17
  %v63 = vsel %vm62, %v57, %v59
  %v64 = vsel %vm62, %v59, %v57
  %v65 = vlaneseq
  %v66 = vshrl.u32 %v65, 7
  %v67 = vsub.s32 0, %v66
  %v68 = vrot.slane %v38, %v67
  %v69 = vlaneseq
  %v70 = vshrl.u32 %v69, 7
  %v71 = vsub.s32 0, %v70
  %v72 = vrot.slane %v39, %v71
  %v73 = vmul.f32 %v64, %v68
  %v74 = vmul.f32 %v63, %v72
  %75 = vset.pattern.permute.xlu0 0
  %76 = vperm.xlu0 %75, %v40
  %v77 = vpop.permute.xlu0 %76
  %v79 = vmul.f32 %v77, %v73
  %v80 = vmul.f32 %v77, %v74
  %v81 = vadd.f32 %v54, %v79
  %v82 = vadd.f32 %v55, %v80
  %83 = vrot.lane.b32.xlu0 %v36, 16
  %v84 = vpop.permute.xlu0 %83
  %85 = vrot.lane.b32.xlu0 %v37, 16
  %v86 = vpop.permute.xlu0 %85
  %vm87 = vcmp.lt.s32.totalorder %v61, 16
  %v88 = vsel %vm87, %v84, %v86
  %v89 = vsel %vm87, %v86, %v84
  %v90 = vlaneseq
  %v91 = vshrl.u32 %v90, 7
  %v92 = vsub.s32 1, %v91
  %v93 = vrot.slane %v38, %v92
  %v94 = vlaneseq
  %v95 = vshrl.u32 %v94, 7
  %v96 = vsub.s32 1, %v95
  %v97 = vrot.slane %v39, %v96
  %v98 = vmul.f32 %v89, %v93
  %v99 = vmul.f32 %v88, %v97
  %100 = vset.pattern.permute.xlu0 1
  %101 = vperm.xlu0 %100, %v40
  %v102 = vpop.permute.xlu0 %101
  %v104 = vmul.f32 %v102, %v98
  %v105 = vmul.f32 %v102, %v99
  %v106 = vadd.f32 %v81, %v104
  %v107 = vadd.f32 %v82, %v105
  %108 = vrot.lane.b32.xlu0 %v36, 15
  %v109 = vpop.permute.xlu0 %108
  %110 = vrot.lane.b32.xlu0 %v37, 15
  %v111 = vpop.permute.xlu0 %110
  %vm112 = vcmp.lt.s32.totalorder %v61, 15
  %v113 = vsel %vm112, %v109, %v111
  %v114 = vsel %vm112, %v111, %v109
  %v115 = vlaneseq
  %v116 = vshrl.u32 %v115, 7
  %v117 = vsub.s32 2, %v116
  %v118 = vrot.slane %v38, %v117
  %v119 = vlaneseq
  %v120 = vshrl.u32 %v119, 7
  %v121 = vsub.s32 2, %v120
  %v122 = vrot.slane %v39, %v121
  %v123 = vmul.f32 %v114, %v118
  %v124 = vmul.f32 %v113, %v122
  %125 = vset.pattern.permute.xlu0 2
  %126 = vperm.xlu0 %125, %v40
  %v127 = vpop.permute.xlu0 %126
  %v129 = vmul.f32 %v127, %v123
  %v130 = vmul.f32 %v127, %v124
  %v131 = vadd.f32 %v106, %v129
  %v132 = vadd.f32 %v107, %v130
  %133 = vrot.lane.b32.xlu0 %v36, 1
  %v134 = vpop.permute.xlu0 %133
  %135 = vrot.lane.b32.xlu0 %v37, 1
  %v136 = vpop.permute.xlu0 %135
  %vm137 = vcmp.lt.s32.totalorder %v61, 1
  %v138 = vsel %vm137, %v134, %v136
  %v139 = vsel %vm137, %v136, %v134
  %v140 = vlaneseq
  %v141 = vshrl.u32 %v140, 7
  %v142 = vsub.s32 3, %v141
  %v143 = vrot.slane %v38, %v142
  %v144 = vlaneseq
  %v145 = vshrl.u32 %v144, 7
  %v146 = vsub.s32 3, %v145
  %v147 = vrot.slane %v39, %v146
  %v148 = vmul.f32 %v139, %v143
  %v149 = vmul.f32 %v138, %v147
  %150 = vset.pattern.permute.xlu0 3
  %151 = vperm.xlu0 %150, %v40
  %v152 = vpop.permute.xlu0 %151
  %v154 = vmul.f32 %v152, %v148
  %v155 = vmul.f32 %v152, %v149
  %v156 = vadd.f32 %v131, %v154
  %v157 = vadd.f32 %v132, %v155
  %158 = vrot.lane.b32.xlu0 %v36, 127
  %v159 = vpop.permute.xlu0 %158
  %160 = vrot.lane.b32.xlu0 %v37, 127
  %v161 = vpop.permute.xlu0 %160
  %vm162 = vcmp.lt.s32.totalorder %v61, 127
  %v163 = vsel %vm162, %v159, %v161
  %v164 = vsel %vm162, %v161, %v159
  %v165 = vlaneseq
  %v166 = vshrl.u32 %v165, 7
  %v167 = vsub.s32 4, %v166
  %v168 = vrot.slane %v38, %v167
  %v169 = vlaneseq
  %v170 = vshrl.u32 %v169, 7
  %v171 = vsub.s32 4, %v170
  %v172 = vrot.slane %v39, %v171
  %v173 = vmul.f32 %v163, %v168
  %v174 = vmul.f32 %v164, %v172
  %175 = vset.pattern.permute.xlu0 5
  %176 = vperm.xlu0 %175, %v40
  %v177 = vpop.permute.xlu0 %176
  %v179 = vmul.f32 %v177, %v173
  %v180 = vmul.f32 %v177, %v174
  %v181 = vadd.f32 %v156, %v179
  %v182 = vadd.f32 %v157, %v180
  %183 = vrot.lane.b32.xlu0 %v36, 113
  %v184 = vpop.permute.xlu0 %183
  %185 = vrot.lane.b32.xlu0 %v37, 113
  %v186 = vpop.permute.xlu0 %185
  %vm187 = vcmp.lt.s32.totalorder %v61, 113
  %v188 = vsel %vm187, %v184, %v186
  %v189 = vsel %vm187, %v186, %v184
  %v190 = vlaneseq
  %v191 = vshrl.u32 %v190, 7
  %v192 = vsub.s32 5, %v191
  %v193 = vrot.slane %v38, %v192
  %v194 = vlaneseq
  %v195 = vshrl.u32 %v194, 7
  %v196 = vsub.s32 5, %v195
  %v197 = vrot.slane %v39, %v196
  %v198 = vmul.f32 %v188, %v193
  %v199 = vmul.f32 %v189, %v197
  %200 = vset.pattern.permute.xlu0 6
  %201 = vperm.xlu0 %200, %v40
  %v202 = vpop.permute.xlu0 %201
  %v204 = vmul.f32 %v202, %v198
  %v205 = vmul.f32 %v202, %v199
  %v206 = vadd.f32 %v181, %v204
  %v207 = vadd.f32 %v182, %v205
  %208 = vrot.lane.b32.xlu0 %v36, 112
  %v209 = vpop.permute.xlu0 %208
  %210 = vrot.lane.b32.xlu0 %v37, 112
  %v211 = vpop.permute.xlu0 %210
  %vm212 = vcmp.lt.s32.totalorder %v61, 112
  %v213 = vsel %vm212, %v209, %v211
  %v214 = vsel %vm212, %v211, %v209
  %v215 = vlaneseq
  %v216 = vshrl.u32 %v215, 7
  %v217 = vsub.s32 6, %v216
  %v218 = vrot.slane %v38, %v217
  %v219 = vlaneseq
  %v220 = vshrl.u32 %v219, 7
  %v221 = vsub.s32 6, %v220
  %v222 = vrot.slane %v39, %v221
  %v223 = vmul.f32 %v213, %v218
  %v224 = vmul.f32 %v214, %v222
  %225 = vset.pattern.permute.xlu0 7
  %226 = vperm.xlu0 %225, %v40
  %v227 = vpop.permute.xlu0 %226
  %v229 = vmul.f32 %v227, %v223
  %v230 = vmul.f32 %v227, %v224
  %v231 = vadd.f32 %v206, %v229
  %v232 = vadd.f32 %v207, %v230
  %233 = vrot.lane.b32.xlu0 %v36, 111
  %v234 = vpop.permute.xlu0 %233
  %235 = vrot.lane.b32.xlu0 %v37, 111
  %v236 = vpop.permute.xlu0 %235
  %vm237 = vcmp.lt.s32.totalorder %v61, 111
  %v238 = vsel %vm237, %v234, %v236
  %v239 = vsel %vm237, %v236, %v234
  %v240 = vlaneseq
  %v241 = vshrl.u32 %v240, 7
  %v242 = vsub.s32 7, %v241
  %v243 = vrot.slane %v38, %v242
  %v244 = vlaneseq
  %v245 = vshrl.u32 %v244, 7
  %v246 = vsub.s32 7, %v245
  %v247 = vrot.slane %v39, %v246
  %v248 = vmul.f32 %v238, %v243
  %v249 = vmul.f32 %v239, %v247
  %250 = vset.pattern.permute.xlu0 8
  %251 = vperm.xlu0 %250, %v40
  %v252 = vpop.permute.xlu0 %251
  %v254 = vmul.f32 %v252, %v248
  %v255 = vmul.f32 %v252, %v249
  %v256 = vadd.f32 %v231, %v254
  %v257 = vadd.f32 %v232, %v255
  %v258 = vld [vmem:[%s4] sm:$0xff]
  %260 = vset.pattern.permute.xlu0 0
  %261 = vperm.xlu0 %260, %v258
  %v262 = vpop.permute.xlu0 %261
  %v264 = vmul.f32 %v256, %v262
  %v265 = vmul.f32 %v257, %v262
  %v266 = vld [vmem:[%s5] sm:$0xff]
  %268 = vset.pattern.permute.xlu0 0
  %269 = vperm.xlu0 %268, %v266
  %v270 = vpop.permute.xlu0 %269
  %v272 = vadd.f32 %v264, %v270
  %v273 = vadd.f32 %v265, %v270
  %v274 = vmax.f32 %v272, 0.0
  %v275 = vmax.f32 %v273, 0.0
  %v276 = vld [vmem:[%s6] sm:$0xff]
  %v277 = vld [vmem:[%s7] sm:$0xff]
  %279 = vset.pattern.permute.xlu0 0
  %280 = vperm.xlu0 %279, %v276
  %v281 = vpop.permute.xlu0 %280
  %v283 = vlaneseq
  %v284 = vshrl.u32 %v283, 7
  %v285 = vsub.s32 0, %v284
  %v286 = vrot.slane %v274, %v285
  %v287 = vlaneseq
  %v288 = vshrl.u32 %v287, 7
  %v289 = vsub.s32 0, %v288
  %v290 = vrot.slane %v275, %v289
  %v291 = vmul.f32 %v281, %v286
  %v292 = vmul.f32 %v281, %v290
  %294 = vset.pattern.permute.xlu0 0
  %295 = vperm.xlu0 %294, %v277
  %v296 = vpop.permute.xlu0 %295
  %v298 = vadd.f32 %v296, %v291
  %v299 = vadd.f32 %v296, %v292
  %300 = vset.pattern.permute.xlu0 1
  %301 = vperm.xlu0 %300, %v276
  %v302 = vpop.permute.xlu0 %301
  %v304 = vlaneseq
  %v305 = vshrl.u32 %v304, 7
  %v306 = vsub.s32 1, %v305
  %v307 = vrot.slane %v274, %v306
  %v308 = vlaneseq
  %v309 = vshrl.u32 %v308, 7
  %v310 = vsub.s32 1, %v309
  %v311 = vrot.slane %v275, %v310
  %v312 = vmul.f32 %v302, %v307
  %v313 = vmul.f32 %v302, %v311
  %v314 = vadd.f32 %v298, %v312
  %v315 = vadd.f32 %v299, %v313
  %316 = vset.pattern.permute.xlu0 2
  %317 = vperm.xlu0 %316, %v276
  %v318 = vpop.permute.xlu0 %317
  %v320 = vlaneseq
  %v321 = vshrl.u32 %v320, 7
  %v322 = vsub.s32 2, %v321
  %v323 = vrot.slane %v274, %v322
  %v324 = vlaneseq
  %v325 = vshrl.u32 %v324, 7
  %v326 = vsub.s32 2, %v325
  %v327 = vrot.slane %v275, %v326
  %v328 = vmul.f32 %v318, %v323
  %v329 = vmul.f32 %v318, %v327
  %v330 = vadd.f32 %v314, %v328
  %v331 = vadd.f32 %v315, %v329
  %332 = vset.pattern.permute.xlu0 3
  %333 = vperm.xlu0 %332, %v276
  %v334 = vpop.permute.xlu0 %333
  %v336 = vlaneseq
  %v337 = vshrl.u32 %v336, 7
  %v338 = vsub.s32 3, %v337
  %v339 = vrot.slane %v274, %v338
  %v340 = vlaneseq
  %v341 = vshrl.u32 %v340, 7
  %v342 = vsub.s32 3, %v341
  %v343 = vrot.slane %v275, %v342
  %v344 = vmul.f32 %v334, %v339
  %v345 = vmul.f32 %v334, %v343
  %v346 = vadd.f32 %v330, %v344
  %v347 = vadd.f32 %v331, %v345
  %v348 = vlaneseq
  %v349 = vshrl.u32 %v348, 7
  %v350 = vsub.s32 4, %v349
  %v351 = vrot.slane %v274, %v350
  %v352 = vlaneseq
  %v353 = vshrl.u32 %v352, 7
  %v354 = vsub.s32 4, %v353
  %v355 = vrot.slane %v275, %v354
  %v356 = vmul.f32 %v281, %v351
  %v357 = vmul.f32 %v281, %v355
  %v358 = vadd.f32 %v296, %v356
  %v359 = vadd.f32 %v296, %v357
  %v360 = vlaneseq
  %v361 = vshrl.u32 %v360, 7
  %v362 = vsub.s32 5, %v361
  %v363 = vrot.slane %v274, %v362
  %v364 = vlaneseq
  %v365 = vshrl.u32 %v364, 7
  %v366 = vsub.s32 5, %v365
  %v367 = vrot.slane %v275, %v366
  %v368 = vmul.f32 %v302, %v363
  %v369 = vmul.f32 %v302, %v367
  %v370 = vadd.f32 %v358, %v368
  %v371 = vadd.f32 %v359, %v369
  %v372 = vlaneseq
  %v373 = vshrl.u32 %v372, 7
  %v374 = vsub.s32 6, %v373
  %v375 = vrot.slane %v274, %v374
  %v376 = vlaneseq
  %v377 = vshrl.u32 %v376, 7
  %v378 = vsub.s32 6, %v377
  %v379 = vrot.slane %v275, %v378
  %v380 = vmul.f32 %v318, %v375
  %v381 = vmul.f32 %v318, %v379
  %v382 = vadd.f32 %v370, %v380
  %v383 = vadd.f32 %v371, %v381
  %v384 = vlaneseq
  %v385 = vshrl.u32 %v384, 7
  %v386 = vsub.s32 7, %v385
  %v387 = vrot.slane %v274, %v386
  %v388 = vlaneseq
  %v389 = vshrl.u32 %v388, 7
  %v390 = vsub.s32 7, %v389
  %v391 = vrot.slane %v275, %v390
  %v392 = vmul.f32 %v334, %v387
  %v393 = vmul.f32 %v334, %v391
  %v394 = vadd.f32 %v382, %v392
  %v395 = vadd.f32 %v383, %v393
  %v396 = vld [vmem:[#allocation2] sm:$0xff]
  %v397 = vadd.f32 %v346, %v347
  %398 = vadd.xlane.f32.xlu0 %v397
  %v399 = vpop.xlane.xlu0 %398
  %v400 = vadd.f32 %v396, %v399
  %vm401 = vcmask 7168
  %402 = vst.msk [vmem:[#allocation2] sm:$0xff] %vm401, %v400
  %v403 = vld [vmem:[#allocation2] sm:$0xff]
  %v404 = vmul.f32 %v346, %v346
  %v405 = vmul.f32 %v347, %v347
  %v406 = vadd.f32 %v404, %v405
  %407 = vadd.xlane.f32.xlu0 %v406
  %v408 = vpop.xlane.xlu0 %407
  %v409 = vadd.f32 %v403, %v408
  %vm410 = vcmask 15368
  %411 = vst.msk [vmem:[#allocation2] sm:$0xff] %vm410, %v409
  %v412 = vld [vmem:[#allocation2 + $0x8] sm:$0xff]
  %v413 = vadd.f32 %v394, %v395
  %414 = vadd.xlane.f32.xlu0 %v413
  %v415 = vpop.xlane.xlu0 %414
  %v416 = vadd.f32 %v412, %v415
  %417 = vst.msk [vmem:[#allocation2 + $0x8] sm:$0xff] %vm401, %v416
  %v418 = vld [vmem:[#allocation2 + $0x8] sm:$0xff]
  %v419 = vmul.f32 %v394, %v394
  %v420 = vmul.f32 %v395, %v395
  %v421 = vadd.f32 %v419, %v420
  %422 = vadd.xlane.f32.xlu0 %v421
  %v423 = vpop.xlane.xlu0 %422
  %v424 = vadd.f32 %v418, %v423
  %425 = vst.msk [vmem:[#allocation2 + $0x8] sm:$0xff] %vm410, %v424
  // Predicated region
  $region38: #{depthwise_separable_conv.4} parent=0 // pred_check
    %p426 = pneg %p29
  $region39: #{depthwise_separable_conv.4} parent=0 // pred_check_branch
    %428 = sbr.rel (%p426) target = $region41
  $region40: #{depthwise_separable_conv.4} parent=0 // pred_region
    %v429 = vld [vmem:[#allocation2] sm:$0xff]
    %v430 = vld [vmem:[#allocation2 + $0x8] sm:$0xff]
    %vm431 = vcmask 15360
    %432 = vst.msk [vmem:[%s8] sm:$0xff] %vm431, %v429
    %433 = vst.msk [vmem:[%s8 + $0x8] sm:$0xff] %vm431, %v430
  $region41: #{depthwise_separable_conv.4} parent=0 // pred_fallthru
    _
  // Predicated region
  $region42: #{depthwise_separable_conv.4} parent=0 // pred_check
    _
  $region43: #{depthwise_separable_conv.4} parent=0 // pred_check_branch
    %435 = sbr.rel (0) target = $region45
  $region44: #{depthwise_separable_conv.4} parent=0 // pred_region
    _
  $region45: #{depthwise_separable_conv.4} parent=0 // pred_fallthru
    _
  // Predicated region
  $region46: #{depthwise_separable_conv.4} parent=0 // pred_check
    _
  $region47: #{depthwise_separable_conv.4} parent=0 // pred_check_branch
    %437 = sbr.rel (0) target = $region49
  $region48: #{depthwise_separable_conv.4} parent=0 // pred_region
    _
  $region49: #{depthwise_separable_conv.4} parent=0 // pred_fallthru
    _

// kernel: depthwise_separable_conv.5
$region0: #{depthwise_separable_conv.5}
  #allocation0 [shape = 'u32[]', space=smem, size = 0x4, offset = 0x4, fixed_abs, tag = 'smem constant byte address 0x4 - core index']
  #allocation1 [shape = 'u32[144,128]{1,0:T(1,128)}', space=vmem, size = 0x12000, scoped, tag = 'internal scratch']
  %s0 = inlined_call_operand.vmem [shape: f32[8,256], index: 0, kind: input, shape index: {}]
  %s1 = inlined_call_operand.vmem [shape: f32[8,256], index: 1, kind: input, shape index: {}]
  %s2 = inlined_call_operand.vmem [shape: f32[8,9], index: 2, kind: input, shape index: {}]
  %s3 = inlined_call_operand.vmem [shape: f32[8,1], index: 3, kind: input, shape index: {}]
  %s4 = inlined_call_operand.vmem [shape: f32[8,1], index: 4, kind: input, shape index: {}]
  %s5 = inlined_call_operand.vmem [shape: f32[8,1], index: 5, kind: input, shape index: {}]
  %s6 = inlined_call_operand.vmem [shape: f32[8,4], index: 6, kind: input, shape index: {}]
  %s7 = inlined_call_operand.vmem [shape: f32[8,1], index: 7, kind: input, shape index: {}]
  %s8 = inlined_call_operand.vmem [shape: f32[8,1], index: 8, kind: input, shape index: {}]
  %s9 = inlined_call_operand.vmem [shape: f32[8,1], index: 9, kind: input, shape index: {}]
  %s10 = inlined_call_operand.vmem [shape: f32[16,256], index: 10, kind: output, shape index: {}]
  %s11 = sld [smem:[#allocation0]]
  $region50: #{depthwise_separable_conv.5} parent=0
    _
  %s13 = ssub.s32 1, %s11
  %s14 = scalar_select 0, %s13, %s11
  // Predicated region
  $region2: #{depthwise_separable_conv.5} parent=0 // pred_check
    _
  $region3: #{depthwise_separable_conv.5} parent=0 // pred_check_branch
    %16 = sbr.rel (0) target = $region5
  $region4: #{depthwise_separable_conv.5} parent=0 // pred_region
    _
  $region5: #{depthwise_separable_conv.5} parent=0 // pred_fallthru
    _
  // Predicated region
  $region6: #{depthwise_separable_conv.5} parent=0 // pred_check
    _
  $region7: #{depthwise_separable_conv.5} parent=0 // pred_check_branch
    %18 = sbr.rel (0) target = $region9
  $region8: #{depthwise_separable_conv.5} parent=0 // pred_region
    _
  $region9: #{depthwise_separable_conv.5} parent=0 // pred_fallthru
    _
  // Predicated region
  $region10: #{depthwise_separable_conv.5} parent=0 // pred_check
    _
  $region11: #{depthwise_separable_conv.5} parent=0 // pred_check_branch
    %20 = sbr.rel (0) target = $region13
  $region12: #{depthwise_separable_conv.5} parent=0 // pred_region
    _
  $region13: #{depthwise_separable_conv.5} parent=0 // pred_fallthru
    _
  // Predicated region
  $region14: #{depthwise_separable_conv.5} parent=0 // pred_check
    _
  $region15: #{depthwise_separable_conv.5} parent=0 // pred_check_branch
    %22 = sbr.rel (0) target = $region17
  $region16: #{depthwise_separable_conv.5} parent=0 // pred_region
    _
  $region17: #{depthwise_separable_conv.5} parent=0 // pred_fallthru
    _
  // Predicated region
  $region18: #{depthwise_separable_conv.5} parent=0 // pred_check
    _
  $region19: #{depthwise_separable_conv.5} parent=0 // pred_check_branch
    %24 = sbr.rel (0) target = $region21
  $region20: #{depthwise_separable_conv.5} parent=0 // pred_region
    _
  $region21: #{depthwise_separable_conv.5} parent=0 // pred_fallthru
    _
  // Predicated region
  $region22: #{depthwise_separable_conv.5} parent=0 // pred_check
    _
  $region23: #{depthwise_separable_conv.5} parent=0 // pred_check_branch
    %26 = sbr.rel (0) target = $region25
  $region24: #{depthwise_separable_conv.5} parent=0 // pred_region
    _
  $region25: #{depthwise_separable_conv.5} parent=0 // pred_fallthru
    _
  // Predicated region
  $region26: #{depthwise_separable_conv.5} parent=0 // pred_check
    _
  $region27: #{depthwise_separable_conv.5} parent=0 // pred_check_branch
    %28 = sbr.rel (0) target = $region29
  $region28: #{depthwise_separable_conv.5} parent=0 // pred_region
    _
  $region29: #{depthwise_separable_conv.5} parent=0 // pred_fallthru
    _
  // Predicated region
  $region30: #{depthwise_separable_conv.5} parent=0 // pred_check
    _
  $region31: #{depthwise_separable_conv.5} parent=0 // pred_check_branch
    %30 = sbr.rel (0) target = $region33
  $region32: #{depthwise_separable_conv.5} parent=0 // pred_region
    _
  $region33: #{depthwise_separable_conv.5} parent=0 // pred_fallthru
    _
  // Predicated region
  $region34: #{depthwise_separable_conv.5} parent=0 // pred_check
    _
  $region35: #{depthwise_separable_conv.5} parent=0 // pred_check_branch
    %32 = sbr.rel (0) target = $region37
  $region36: #{depthwise_separable_conv.5} parent=0 // pred_region
    _
  $region37: #{depthwise_separable_conv.5} parent=0 // pred_fallthru
    _
  // Predicated region
  $region38: #{depthwise_separable_conv.5} parent=0 // pred_check
    _
  $region39: #{depthwise_separable_conv.5} parent=0 // pred_check_branch
    %34 = sbr.rel (0) target = $region41
  $region40: #{depthwise_separable_conv.5} parent=0 // pred_region
    _
  $region41: #{depthwise_separable_conv.5} parent=0 // pred_fallthru
    _
  %v35 = vld [vmem:[%s0] sm:$0xff]
  %v36 = vld [vmem:[%s0 + $0x8] sm:$0xff]
  %v37 = vld [vmem:[%s1] sm:$0xff]
  %v38 = vld [vmem:[%s1 + $0x8] sm:$0xff]
  %v39 = vld [vmem:[%s2] sm:$0xff]
  %v40 = vld [vmem:[%s3] sm:$0xff]
  %42 = vset.pattern.permute.xlu0 4
  %43 = vperm.xlu0 %42, %v39
  %v44 = vpop.permute.xlu0 %43
  %v46 = vmul.f32 %v44, %v35
  %v47 = vmul.f32 %v44, %v36
  %49 = vset.pattern.permute.xlu0 0
  %50 = vperm.xlu0 %49, %v40
  %v51 = vpop.permute.xlu0 %50
  %v53 = vadd.f32 %v46, %v51
  %v54 = vadd.f32 %v47, %v51
  %55 = vrot.lane.b32.xlu0 %v35, 17
  %v56 = vpop.permute.xlu0 %55
  %57 = vrot.lane.b32.xlu0 %v36, 17
  %v58 = vpop.permute.xlu0 %57
  %v59 = vlaneseq
  %v60 = vand.u32 %v59, 127
  %vm61 = vcmp.lt.s32.totalorder %v60, 17
  %v62 = vsel %vm61, %v56, %v58
  %v63 = vsel %vm61, %v58, %v56
  %v64 = vlaneseq
  %v65 = vshrl.u32 %v64, 7
  %v66 = vsub.s32 0, %v65
  %v67 = vrot.slane %v37, %v66
  %v68 = vlaneseq
  %v69 = vshrl.u32 %v68, 7
  %v70 = vsub.s32 0, %v69
  %v71 = vrot.slane %v38, %v70
  %v72 = vmul.f32 %v63, %v67
  %v73 = vmul.f32 %v62, %v71
  %74 = vset.pattern.permute.xlu0 0
  %75 = vperm.xlu0 %74, %v39
  %v76 = vpop.permute.xlu0 %75
  %v78 = vmul.f32 %v76, %v72
  %v79 = vmul.f32 %v76, %v73
  %v80 = vadd.f32 %v53, %v78
  %v81 = vadd.f32 %v54, %v79
  %82 = vrot.lane.b32.xlu0 %v35, 16
  %v83 = vpop.permute.xlu0 %82
  %84 = vrot.lane.b32.xlu0 %v36, 16
  %v85 = vpop.permute.xlu0 %84
  %vm86 = vcmp.lt.s32.totalorder %v60, 16
  %v87 = vsel %vm86, %v83, %v85
  %v88 = vsel %vm86, %v85, %v83
  %v89 = vlaneseq
  %v90 = vshrl.u32 %v89, 7
  %v91 = vsub.s32 1, %v90
  %v92 = vrot.slane %v37, %v91
  %v93 = vlaneseq
  %v94 = vshrl.u32 %v93, 7
  %v95 = vsub.s32 1, %v94
  %v96 = vrot.slane %v38, %v95
  %v97 = vmul.f32 %v88, %v92
  %v98 = vmul.f32 %v87, %v96
  %99 = vset.pattern.permute.xlu0 1
  %100 = vperm.xlu0 %99, %v39
  %v101 = vpop.permute.xlu0 %100
  %v103 = vmul.f32 %v101, %v97
  %v104 = vmul.f32 %v101, %v98
  %v105 = vadd.f32 %v80, %v103
  %v106 = vadd.f32 %v81, %v104
  %107 = vrot.lane.b32.xlu0 %v35, 15
  %v108 = vpop.permute.xlu0 %107
  %109 = vrot.lane.b32.xlu0 %v36, 15
  %v110 = vpop.permute.xlu0 %109
  %vm111 = vcmp.lt.s32.totalorder %v60, 15
  %v112 = vsel %vm111, %v108, %v110
  %v113 = vsel %vm111, %v110, %v108
  %v114 = vlaneseq
  %v115 = vshrl.u32 %v114, 7
  %v116 = vsub.s32 2, %v115
  %v117 = vrot.slane %v37, %v116
  %v118 = vlaneseq
  %v119 = vshrl.u32 %v118, 7
  %v120 = vsub.s32 2, %v119
  %v121 = vrot.slane %v38, %v120
  %v122 = vmul.f32 %v113, %v117
  %v123 = vmul.f32 %v112, %v121
  %124 = vset.pattern.permute.xlu0 2
  %125 = vperm.xlu0 %124, %v39
  %v126 = vpop.permute.xlu0 %125
  %v128 = vmul.f32 %v126, %v122
  %v129 = vmul.f32 %v126, %v123
  %v130 = vadd.f32 %v105, %v128
  %v131 = vadd.f32 %v106, %v129
  %132 = vrot.lane.b32.xlu0 %v35, 1
  %v133 = vpop.permute.xlu0 %132
  %134 = vrot.lane.b32.xlu0 %v36, 1
  %v135 = vpop.permute.xlu0 %134
  %vm136 = vcmp.lt.s32.totalorder %v60, 1
  %v137 = vsel %vm136, %v133, %v135
  %v138 = vsel %vm136, %v135, %v133
  %v139 = vlaneseq
  %v140 = vshrl.u32 %v139, 7
  %v141 = vsub.s32 3, %v140
  %v142 = vrot.slane %v37, %v141
  %v143 = vlaneseq
  %v144 = vshrl.u32 %v143, 7
  %v145 = vsub.s32 3, %v144
  %v146 = vrot.slane %v38, %v145
  %v147 = vmul.f32 %v138, %v142
  %v148 = vmul.f32 %v137, %v146
  %149 = vset.pattern.permute.xlu0 3
  %150 = vperm.xlu0 %149, %v39
  %v151 = vpop.permute.xlu0 %150
  %v153 = vmul.f32 %v151, %v147
  %v154 = vmul.f32 %v151, %v148
  %v155 = vadd.f32 %v130, %v153
  %v156 = vadd.f32 %v131, %v154
  %157 = vrot.lane.b32.xlu0 %v35, 127
  %v158 = vpop.permute.xlu0 %157
  %159 = vrot.lane.b32.xlu0 %v36, 127
  %v160 = vpop.permute.xlu0 %159
  %vm161 = vcmp.lt.s32.totalorder %v60, 127
  %v162 = vsel %vm161, %v158, %v160
  %v163 = vsel %vm161, %v160, %v158
  %v164 = vlaneseq
  %v165 = vshrl.u32 %v164, 7
  %v166 = vsub.s32 4, %v165
  %v167 = vrot.slane %v37, %v166
  %v168 = vlaneseq
  %v169 = vshrl.u32 %v168, 7
  %v170 = vsub.s32 4, %v169
  %v171 = vrot.slane %v38, %v170
  %v172 = vmul.f32 %v162, %v167
  %v173 = vmul.f32 %v163, %v171
  %174 = vset.pattern.permute.xlu0 5
  %175 = vperm.xlu0 %174, %v39
  %v176 = vpop.permute.xlu0 %175
  %v178 = vmul.f32 %v176, %v172
  %v179 = vmul.f32 %v176, %v173
  %v180 = vadd.f32 %v155, %v178
  %v181 = vadd.f32 %v156, %v179
  %182 = vrot.lane.b32.xlu0 %v35, 113
  %v183 = vpop.permute.xlu0 %182
  %184 = vrot.lane.b32.xlu0 %v36, 113
  %v185 = vpop.permute.xlu0 %184
  %vm186 = vcmp.lt.s32.totalorder %v60, 113
  %v187 = vsel %vm186, %v183, %v185
  %v188 = vsel %vm186, %v185, %v183
  %v189 = vlaneseq
  %v190 = vshrl.u32 %v189, 7
  %v191 = vsub.s32 5, %v190
  %v192 = vrot.slane %v37, %v191
  %v193 = vlaneseq
  %v194 = vshrl.u32 %v193, 7
  %v195 = vsub.s32 5, %v194
  %v196 = vrot.slane %v38, %v195
  %v197 = vmul.f32 %v187, %v192
  %v198 = vmul.f32 %v188, %v196
  %199 = vset.pattern.permute.xlu0 6
  %200 = vperm.xlu0 %199, %v39
  %v201 = vpop.permute.xlu0 %200
  %v203 = vmul.f32 %v201, %v197
  %v204 = vmul.f32 %v201, %v198
  %v205 = vadd.f32 %v180, %v203
  %v206 = vadd.f32 %v181, %v204
  %207 = vrot.lane.b32.xlu0 %v35, 112
  %v208 = vpop.permute.xlu0 %207
  %209 = vrot.lane.b32.xlu0 %v36, 112
  %v210 = vpop.permute.xlu0 %209
  %vm211 = vcmp.lt.s32.totalorder %v60, 112
  %v212 = vsel %vm211, %v208, %v210
  %v213 = vsel %vm211, %v210, %v208
  %v214 = vlaneseq
  %v215 = vshrl.u32 %v214, 7
  %v216 = vsub.s32 6, %v215
  %v217 = vrot.slane %v37, %v216
  %v218 = vlaneseq
  %v219 = vshrl.u32 %v218, 7
  %v220 = vsub.s32 6, %v219
  %v221 = vrot.slane %v38, %v220
  %v222 = vmul.f32 %v212, %v217
  %v223 = vmul.f32 %v213, %v221
  %224 = vset.pattern.permute.xlu0 7
  %225 = vperm.xlu0 %224, %v39
  %v226 = vpop.permute.xlu0 %225
  %v228 = vmul.f32 %v226, %v222
  %v229 = vmul.f32 %v226, %v223
  %v230 = vadd.f32 %v205, %v228
  %v231 = vadd.f32 %v206, %v229
  %232 = vrot.lane.b32.xlu0 %v35, 111
  %v233 = vpop.permute.xlu0 %232
  %234 = vrot.lane.b32.xlu0 %v36, 111
  %v235 = vpop.permute.xlu0 %234
  %vm236 = vcmp.lt.s32.totalorder %v60, 111
  %v237 = vsel %vm236, %v233, %v235
  %v238 = vsel %vm236, %v235, %v233
  %v239 = vlaneseq
  %v240 = vshrl.u32 %v239, 7
  %v241 = vsub.s32 7, %v240
  %v242 = vrot.slane %v37, %v241
  %v243 = vlaneseq
  %v244 = vshrl.u32 %v243, 7
  %v245 = vsub.s32 7, %v244
  %v246 = vrot.slane %v38, %v245
  %v247 = vmul.f32 %v237, %v242
  %v248 = vmul.f32 %v238, %v246
  %249 = vset.pattern.permute.xlu0 8
  %250 = vperm.xlu0 %249, %v39
  %v251 = vpop.permute.xlu0 %250
  %v253 = vmul.f32 %v251, %v247
  %v254 = vmul.f32 %v251, %v248
  %v255 = vadd.f32 %v230, %v253
  %v256 = vadd.f32 %v231, %v254
  %v257 = vld [vmem:[%s4] sm:$0xff]
  %259 = vset.pattern.permute.xlu0 0
  %260 = vperm.xlu0 %259, %v257
  %v261 = vpop.permute.xlu0 %260
  %v263 = vmul.f32 %v255, %v261
  %v264 = vmul.f32 %v256, %v261
  %v265 = vld [vmem:[%s5] sm:$0xff]
  %267 = vset.pattern.permute.xlu0 0
  %268 = vperm.xlu0 %267, %v265
  %v269 = vpop.permute.xlu0 %268
  %v271 = vadd.f32 %v263, %v269
  %v272 = vadd.f32 %v264, %v269
  %v273 = vmax.f32 %v271, 0.0
  %v274 = vmax.f32 %v272, 0.0
  %v275 = vld [vmem:[%s6] sm:$0xff]
  %v276 = vld [vmem:[%s7] sm:$0xff]
  %278 = vset.pattern.permute.xlu0 0
  %279 = vperm.xlu0 %278, %v275
  %v280 = vpop.permute.xlu0 %279
  %v282 = vlaneseq
  %v283 = vshrl.u32 %v282, 7
  %v284 = vsub.s32 0, %v283
  %v285 = vrot.slane %v273, %v284
  %v286 = vlaneseq
  %v287 = vshrl.u32 %v286, 7
  %v288 = vsub.s32 0, %v287
  %v289 = vrot.slane %v274, %v288
  %v290 = vmul.f32 %v280, %v285
  %v291 = vmul.f32 %v280, %v289
  %293 = vset.pattern.permute.xlu0 0
  %294 = vperm.xlu0 %293, %v276
  %v295 = vpop.permute.xlu0 %294
  %v297 = vadd.f32 %v295, %v290
  %v298 = vadd.f32 %v295, %v291
  %299 = vset.pattern.permute.xlu0 1
  %300 = vperm.xlu0 %299, %v275
  %v301 = vpop.permute.xlu0 %300
  %v303 = vlaneseq
  %v304 = vshrl.u32 %v303, 7
  %v305 = vsub.s32 1, %v304
  %v306 = vrot.slane %v273, %v305
  %v307 = vlaneseq
  %v308 = vshrl.u32 %v307, 7
  %v309 = vsub.s32 1, %v308
  %v310 = vrot.slane %v274, %v309
  %v311 = vmul.f32 %v301, %v306
  %v312 = vmul.f32 %v301, %v310
  %v313 = vadd.f32 %v297, %v311
  %v314 = vadd.f32 %v298, %v312
  %315 = vset.pattern.permute.xlu0 2
  %316 = vperm.xlu0 %315, %v275
  %v317 = vpop.permute.xlu0 %316
  %v319 = vlaneseq
  %v320 = vshrl.u32 %v319, 7
  %v321 = vsub.s32 2, %v320
  %v322 = vrot.slane %v273, %v321
  %v323 = vlaneseq
  %v324 = vshrl.u32 %v323, 7
  %v325 = vsub.s32 2, %v324
  %v326 = vrot.slane %v274, %v325
  %v327 = vmul.f32 %v317, %v322
  %v328 = vmul.f32 %v317, %v326
  %v329 = vadd.f32 %v313, %v327
  %v330 = vadd.f32 %v314, %v328
  %331 = vset.pattern.permute.xlu0 3
  %332 = vperm.xlu0 %331, %v275
  %v333 = vpop.permute.xlu0 %332
  %v335 = vlaneseq
  %v336 = vshrl.u32 %v335, 7
  %v337 = vsub.s32 3, %v336
  %v338 = vrot.slane %v273, %v337
  %v339 = vlaneseq
  %v340 = vshrl.u32 %v339, 7
  %v341 = vsub.s32 3, %v340
  %v342 = vrot.slane %v274, %v341
  %v343 = vmul.f32 %v333, %v338
  %v344 = vmul.f32 %v333, %v342
  %v345 = vadd.f32 %v329, %v343
  %v346 = vadd.f32 %v330, %v344
  %v347 = vlaneseq
  %v348 = vshrl.u32 %v347, 7
  %v349 = vsub.s32 4, %v348
  %v350 = vrot.slane %v273, %v349
  %v351 = vlaneseq
  %v352 = vshrl.u32 %v351, 7
  %v353 = vsub.s32 4, %v352
  %v354 = vrot.slane %v274, %v353
  %v355 = vmul.f32 %v280, %v350
  %v356 = vmul.f32 %v280, %v354
  %v357 = vadd.f32 %v295, %v355
  %v358 = vadd.f32 %v295, %v356
  %v359 = vlaneseq
  %v360 = vshrl.u32 %v359, 7
  %v361 = vsub.s32 5, %v360
  %v362 = vrot.slane %v273, %v361
  %v363 = vlaneseq
  %v364 = vshrl.u32 %v363, 7
  %v365 = vsub.s32 5, %v364
  %v366 = vrot.slane %v274, %v365
  %v367 = vmul.f32 %v301, %v362
  %v368 = vmul.f32 %v301, %v366
  %v369 = vadd.f32 %v357, %v367
  %v370 = vadd.f32 %v358, %v368
  %v371 = vlaneseq
  %v372 = vshrl.u32 %v371, 7
  %v373 = vsub.s32 6, %v372
  %v374 = vrot.slane %v273, %v373
  %v375 = vlaneseq
  %v376 = vshrl.u32 %v375, 7
  %v377 = vsub.s32 6, %v376
  %v378 = vrot.slane %v274, %v377
  %v379 = vmul.f32 %v317, %v374
  %v380 = vmul.f32 %v317, %v378
  %v381 = vadd.f32 %v369, %v379
  %v382 = vadd.f32 %v370, %v380
  %v383 = vlaneseq
  %v384 = vshrl.u32 %v383, 7
  %v385 = vsub.s32 7, %v384
  %v386 = vrot.slane %v273, %v385
  %v387 = vlaneseq
  %v388 = vshrl.u32 %v387, 7
  %v389 = vsub.s32 7, %v388
  %v390 = vrot.slane %v274, %v389
  %v391 = vmul.f32 %v333, %v386
  %v392 = vmul.f32 %v333, %v390
  %v393 = vadd.f32 %v381, %v391
  %v394 = vadd.f32 %v382, %v392
  %v395 = vld [vmem:[%s8] sm:$0xff]
  %397 = vset.pattern.permute.xlu0 0
  %398 = vperm.xlu0 %397, %v395
  %v399 = vpop.permute.xlu0 %398
  %v401 = vmul.f32 %v345, %v399
  %v402 = vmul.f32 %v346, %v399
  %v403 = vld [vmem:[%s9] sm:$0xff]
  %405 = vset.pattern.permute.xlu0 0
  %406 = vperm.xlu0 %405, %v403
  %v407 = vpop.permute.xlu0 %406
  %v409 = vadd.f32 %v401, %v407
  %v410 = vadd.f32 %v402, %v407
  %v411 = vmax.f32 %v409, 0.0
  %v412 = vmax.f32 %v410, 0.0
  %413 = vst [vmem:[%s10] sm:$0xff] %v411
  %414 = vst [vmem:[%s10 + $0x8] sm:$0xff] %v412
  %v415 = vld [vmem:[%s8] sm:$0xff]
  %417 = vset.pattern.permute.xlu0 0
  %418 = vperm.xlu0 %417, %v415
  %v419 = vpop.permute.xlu0 %418
  %v421 = vmul.f32 %v393, %v419
  %v422 = vmul.f32 %v394, %v419
  %v423 = vld [vmem:[%s9] sm:$0xff]
  %425 = vset.pattern.permute.xlu0 0
  %426 = vperm.xlu0 %425, %v423
  %v427 = vpop.permute.xlu0 %426
  %v429 = vadd.f32 %v421, %v427
  %v430 = vadd.f32 %v422, %v427
  %v431 = vmax.f32 %v429, 0.0
  %v432 = vmax.f32 %v430, 0.0
  %433 = vst [vmem:[%s10 + $0x10] sm:$0xff] %v431
  %434 = vst [vmem:[%s10 + $0x18] sm:$0xff] %v432
  // Predicated region
  $region42: #{depthwise_separable_conv.5} parent=0 // pred_check
    _
  $region43: #{depthwise_separable_conv.5} parent=0 // pred_check_branch
    %436 = sbr.rel (0) target = $region45
  $region44: #{depthwise_separable_conv.5} parent=0 // pred_region
    _
  $region45: #{depthwise_separable_conv.5} parent=0 // pred_fallthru
    _
  // Predicated region
  $region46: #{depthwise_separable_conv.5} parent=0 // pred_check
    _
  $region47: #{depthwise_separable_conv.5} parent=0 // pred_check_branch
    %438 = sbr.rel (0) target = $region49
  $region48: #{depthwise_separable_conv.5} parent=0 // pred_region
    _
  $region49: #{depthwise_separable_conv.5} parent=0 // pred_fallthru
    _

// kernel: depthwise_separable_conv.3
$region0: #{depthwise_separable_conv.3}
  #allocation0 [shape = 'u32[]', space=smem, size = 0x4, offset = 0x4, fixed_abs, tag = 'smem constant byte address 0x4 - core index']
  #allocation1 [shape = 'u32[144,128]{1,0:T(1,128)}', space=vmem, size = 0x12000, scoped, tag = 'internal scratch']
  #allocation2 [shape = 'f32[8,2]{1,0:T(8,128)}', space=vmem, size = 0x1000, scoped, tag = 'scratch operand']
  %s0 = inlined_call_operand.vmem [shape: f32[8,256], index: 0, kind: input, shape index: {}]
  %s1 = inlined_call_operand.vmem [shape: f32[8,256], index: 1, kind: input, shape index: {}]
  %s2 = inlined_call_operand.vmem [shape: f32[8,9], index: 2, kind: input, shape index: {}]
  %s3 = inlined_call_operand.vmem [shape: f32[8,1], index: 3, kind: input, shape index: {}]
  %s4 = inlined_call_operand.vmem [shape: f32[8,2], index: 4, kind: output, shape index: {}]
  %s5 = sld [smem:[#allocation0]]
  $region34: #{depthwise_separable_conv.3} parent=0
    _
  %s7 = ssub.s32 1, %s5
  %s8 = scalar_select 0, %s7, %s5
  // Predicated region
  $region2: #{depthwise_separable_conv.3} parent=0 // pred_check
    _
  $region3: #{depthwise_separable_conv.3} parent=0 // pred_check_branch
    %10 = sbr.rel (0) target = $region5
  $region4: #{depthwise_separable_conv.3} parent=0 // pred_region
    _
  $region5: #{depthwise_separable_conv.3} parent=0 // pred_fallthru
    _
  // Predicated region
  $region6: #{depthwise_separable_conv.3} parent=0 // pred_check
    _
  $region7: #{depthwise_separable_conv.3} parent=0 // pred_check_branch
    %12 = sbr.rel (0) target = $region9
  $region8: #{depthwise_separable_conv.3} parent=0 // pred_region
    _
  $region9: #{depthwise_separable_conv.3} parent=0 // pred_fallthru
    _
  // Predicated region
  $region10: #{depthwise_separable_conv.3} parent=0 // pred_check
    _
  $region11: #{depthwise_separable_conv.3} parent=0 // pred_check_branch
    %14 = sbr.rel (0) target = $region13
  $region12: #{depthwise_separable_conv.3} parent=0 // pred_region
    _
  $region13: #{depthwise_separable_conv.3} parent=0 // pred_fallthru
    _
  // Predicated region
  $region14: #{depthwise_separable_conv.3} parent=0 // pred_check
    _
  $region15: #{depthwise_separable_conv.3} parent=0 // pred_check_branch
    %16 = sbr.rel (0) target = $region17
  $region16: #{depthwise_separable_conv.3} parent=0 // pred_region
    _
  $region17: #{depthwise_separable_conv.3} parent=0 // pred_fallthru
    _
  %p17 = scmp.eq.s32.totalorder 0, 0
  // Predicated region
  $region18: #{depthwise_separable_conv.3} parent=0 // pred_check
    %p18 = pneg %p17
  $region19: #{depthwise_separable_conv.3} parent=0 // pred_check_branch
    %20 = sbr.rel (%p18) target = $region21
  $region20: #{depthwise_separable_conv.3} parent=0 // pred_region
    %vm21 = vcmask 15360
    %22 = vst.msk [vmem:[#allocation2] sm:$0xff] %vm21, 0.0
  $region21: #{depthwise_separable_conv.3} parent=0 // pred_fallthru
    _
  %v23 = vld [vmem:[%s0] sm:$0xff]
  %v24 = vld [vmem:[%s0 + $0x8] sm:$0xff]
  %v25 = vld [vmem:[%s1] sm:$0xff]
  %v26 = vld [vmem:[%s1 + $0x8] sm:$0xff]
  %v27 = vld [vmem:[%s2] sm:$0xff]
  %v28 = vld [vmem:[%s3] sm:$0xff]
  %30 = vset.pattern.permute.xlu0 4
  %31 = vperm.xlu0 %30, %v27
  %v32 = vpop.permute.xlu0 %31
  %v34 = vmul.f32 %v32, %v23
  %v35 = vmul.f32 %v32, %v24
  %37 = vset.pattern.permute.xlu0 0
  %38 = vperm.xlu0 %37, %v28
  %v39 = vpop.permute.xlu0 %38
  %v41 = vadd.f32 %v34, %v39
  %v42 = vadd.f32 %v35, %v39
  %43 = vrot.lane.b32.xlu0 %v23, 17
  %v44 = vpop.permute.xlu0 %43
  %45 = vrot.lane.b32.xlu0 %v24, 17
  %v46 = vpop.permute.xlu0 %45
  %v47 = vlaneseq
  %v48 = vand.u32 %v47, 127
  %vm49 = vcmp.lt.s32.totalorder %v48, 17
  %v50 = vsel %vm49, %v44, %v46
  %v51 = vsel %vm49, %v46, %v44
  %v52 = vlaneseq
  %v53 = vshrl.u32 %v52, 7
  %v54 = vsub.s32 0, %v53
  %v55 = vrot.slane %v25, %v54
  %v56 = vlaneseq
  %v57 = vshrl.u32 %v56, 7
  %v58 = vsub.s32 0, %v57
  %v59 = vrot.slane %v26, %v58
  %v60 = vmul.f32 %v51, %v55
  %v61 = vmul.f32 %v50, %v59
  %62 = vset.pattern.permute.xlu0 0
  %63 = vperm.xlu0 %62, %v27
  %v64 = vpop.permute.xlu0 %63
  %v66 = vmul.f32 %v64, %v60
  %v67 = vmul.f32 %v64, %v61
  %v68 = vadd.f32 %v41, %v66
  %v69 = vadd.f32 %v42, %v67
  %70 = vrot.lane.b32.xlu0 %v23, 16
  %v71 = vpop.permute.xlu0 %70
  %72 = vrot.lane.b32.xlu0 %v24, 16
  %v73 = vpop.permute.xlu0 %72
  %vm74 = vcmp.lt.s32.totalorder %v48, 16
  %v75 = vsel %vm74, %v71, %v73
  %v76 = vsel %vm74, %v73, %v71
  %v77 = vlaneseq
  %v78 = vshrl.u32 %v77, 7
  %v79 = vsub.s32 1, %v78
  %v80 = vrot.slane %v25, %v79
  %v81 = vlaneseq
  %v82 = vshrl.u32 %v81, 7
  %v83 = vsub.s32 1, %v82
  %v84 = vrot.slane %v26, %v83
  %v85 = vmul.f32 %v76, %v80
  %v86 = vmul.f32 %v75, %v84
  %87 = vset.pattern.permute.xlu0 1
  %88 = vperm.xlu0 %87, %v27
  %v89 = vpop.permute.xlu0 %88
  %v91 = vmul.f32 %v89, %v85
  %v92 = vmul.f32 %v89, %v86
  %v93 = vadd.f32 %v68, %v91
  %v94 = vadd.f32 %v69, %v92
  %95 = vrot.lane.b32.xlu0 %v23, 15
  %v96 = vpop.permute.xlu0 %95
  %97 = vrot.lane.b32.xlu0 %v24, 15
  %v98 = vpop.permute.xlu0 %97
  %vm99 = vcmp.lt.s32.totalorder %v48, 15
  %v100 = vsel %vm99, %v96, %v98
  %v101 = vsel %vm99, %v98, %v96
  %v102 = vlaneseq
  %v103 = vshrl.u32 %v102, 7
  %v104 = vsub.s32 2, %v103
  %v105 = vrot.slane %v25, %v104
  %v106 = vlaneseq
  %v107 = vshrl.u32 %v106, 7
  %v108 = vsub.s32 2, %v107
  %v109 = vrot.slane %v26, %v108
  %v110 = vmul.f32 %v101, %v105
  %v111 = vmul.f32 %v100, %v109
  %112 = vset.pattern.permute.xlu0 2
  %113 = vperm.xlu0 %112, %v27
  %v114 = vpop.permute.xlu0 %113
  %v116 = vmul.f32 %v114, %v110
  %v117 = vmul.f32 %v114, %v111
  %v118 = vadd.f32 %v93, %v116
  %v119 = vadd.f32 %v94, %v117
  %120 = vrot.lane.b32.xlu0 %v23, 1
  %v121 = vpop.permute.xlu0 %120
  %122 = vrot.lane.b32.xlu0 %v24, 1
  %v123 = vpop.permute.xlu0 %122
  %vm124 = vcmp.lt.s32.totalorder %v48, 1
  %v125 = vsel %vm124, %v121, %v123
  %v126 = vsel %vm124, %v123, %v121
  %v127 = vlaneseq
  %v128 = vshrl.u32 %v127, 7
  %v129 = vsub.s32 3, %v128
  %v130 = vrot.slane %v25, %v129
  %v131 = vlaneseq
  %v132 = vshrl.u32 %v131, 7
  %v133 = vsub.s32 3, %v132
  %v134 = vrot.slane %v26, %v133
  %v135 = vmul.f32 %v126, %v130
  %v136 = vmul.f32 %v125, %v134
  %137 = vset.pattern.permute.xlu0 3
  %138 = vperm.xlu0 %137, %v27
  %v139 = vpop.permute.xlu0 %138
  %v141 = vmul.f32 %v139, %v135
  %v142 = vmul.f32 %v139, %v136
  %v143 = vadd.f32 %v118, %v141
  %v144 = vadd.f32 %v119, %v142
  %145 = vrot.lane.b32.xlu0 %v23, 127
  %v146 = vpop.permute.xlu0 %145
  %147 = vrot.lane.b32.xlu0 %v24, 127
  %v148 = vpop.permute.xlu0 %147
  %vm149 = vcmp.lt.s32.totalorder %v48, 127
  %v150 = vsel %vm149, %v146, %v148
  %v151 = vsel %vm149, %v148, %v146
  %v152 = vlaneseq
  %v153 = vshrl.u32 %v152, 7
  %v154 = vsub.s32 4, %v153
  %v155 = vrot.slane %v25, %v154
  %v156 = vlaneseq
  %v157 = vshrl.u32 %v156, 7
  %v158 = vsub.s32 4, %v157
  %v159 = vrot.slane %v26, %v158
  %v160 = vmul.f32 %v150, %v155
  %v161 = vmul.f32 %v151, %v159
  %162 = vset.pattern.permute.xlu0 5
  %163 = vperm.xlu0 %162, %v27
  %v164 = vpop.permute.xlu0 %163
  %v166 = vmul.f32 %v164, %v160
  %v167 = vmul.f32 %v164, %v161
  %v168 = vadd.f32 %v143, %v166
  %v169 = vadd.f32 %v144, %v167
  %170 = vrot.lane.b32.xlu0 %v23, 113
  %v171 = vpop.permute.xlu0 %170
  %172 = vrot.lane.b32.xlu0 %v24, 113
  %v173 = vpop.permute.xlu0 %172
  %vm174 = vcmp.lt.s32.totalorder %v48, 113
  %v175 = vsel %vm174, %v171, %v173
  %v176 = vsel %vm174, %v173, %v171
  %v177 = vlaneseq
  %v178 = vshrl.u32 %v177, 7
  %v179 = vsub.s32 5, %v178
  %v180 = vrot.slane %v25, %v179
  %v181 = vlaneseq
  %v182 = vshrl.u32 %v181, 7
  %v183 = vsub.s32 5, %v182
  %v184 = vrot.slane %v26, %v183
  %v185 = vmul.f32 %v175, %v180
  %v186 = vmul.f32 %v176, %v184
  %187 = vset.pattern.permute.xlu0 6
  %188 = vperm.xlu0 %187, %v27
  %v189 = vpop.permute.xlu0 %188
  %v191 = vmul.f32 %v189, %v185
  %v192 = vmul.f32 %v189, %v186
  %v193 = vadd.f32 %v168, %v191
  %v194 = vadd.f32 %v169, %v192
  %195 = vrot.lane.b32.xlu0 %v23, 112
  %v196 = vpop.permute.xlu0 %195
  %197 = vrot.lane.b32.xlu0 %v24, 112
  %v198 = vpop.permute.xlu0 %197
  %vm199 = vcmp.lt.s32.totalorder %v48, 112
  %v200 = vsel %vm199, %v196, %v198
  %v201 = vsel %vm199, %v198, %v196
  %v202 = vlaneseq
  %v203 = vshrl.u32 %v202, 7
  %v204 = vsub.s32 6, %v203
  %v205 = vrot.slane %v25, %v204
  %v206 = vlaneseq
  %v207 = vshrl.u32 %v206, 7
  %v208 = vsub.s32 6, %v207
  %v209 = vrot.slane %v26, %v208
  %v210 = vmul.f32 %v200, %v205
  %v211 = vmul.f32 %v201, %v209
  %212 = vset.pattern.permute.xlu0 7
  %213 = vperm.xlu0 %212, %v27
  %v214 = vpop.permute.xlu0 %213
  %v216 = vmul.f32 %v214, %v210
  %v217 = vmul.f32 %v214, %v211
  %v218 = vadd.f32 %v193, %v216
  %v219 = vadd.f32 %v194, %v217
  %220 = vrot.lane.b32.xlu0 %v23, 111
  %v221 = vpop.permute.xlu0 %220
  %222 = vrot.lane.b32.xlu0 %v24, 111
  %v223 = vpop.permute.xlu0 %222
  %vm224 = vcmp.lt.s32.totalorder %v48, 111
  %v225 = vsel %vm224, %v221, %v223
  %v226 = vsel %vm224, %v223, %v221
  %v227 = vlaneseq
  %v228 = vshrl.u32 %v227, 7
  %v229 = vsub.s32 7, %v228
  %v230 = vrot.slane %v25, %v229
  %v231 = vlaneseq
  %v232 = vshrl.u32 %v231, 7
  %v233 = vsub.s32 7, %v232
  %v234 = vrot.slane %v26, %v233
  %v235 = vmul.f32 %v225, %v230
  %v236 = vmul.f32 %v226, %v234
  %237 = vset.pattern.permute.xlu0 8
  %238 = vperm.xlu0 %237, %v27
  %v239 = vpop.permute.xlu0 %238
  %v241 = vmul.f32 %v239, %v235
  %v242 = vmul.f32 %v239, %v236
  %v243 = vadd.f32 %v218, %v241
  %v244 = vadd.f32 %v219, %v242
  %v245 = vld [vmem:[#allocation2] sm:$0xff]
  %v246 = vadd.f32 %v243, %v244
  %247 = vadd.xlane.f32.xlu0 %v246
  %v248 = vpop.xlane.xlu0 %247
  %v249 = vadd.f32 %v245, %v248
  %vm250 = vcmask 7168
  %251 = vst.msk [vmem:[#allocation2] sm:$0xff] %vm250, %v249
  %v252 = vld [vmem:[#allocation2] sm:$0xff]
  %v253 = vmul.f32 %v243, %v243
  %v254 = vmul.f32 %v244, %v244
  %v255 = vadd.f32 %v253, %v254
  %256 = vadd.xlane.f32.xlu0 %v255
  %v257 = vpop.xlane.xlu0 %256
  %v258 = vadd.f32 %v252, %v257
  %vm259 = vcmask 15368
  %260 = vst.msk [vmem:[#allocation2] sm:$0xff] %vm259, %v258
  // Predicated region
  $region22: #{depthwise_separable_conv.3} parent=0 // pred_check
    %p261 = pneg %p17
  $region23: #{depthwise_separable_conv.3} parent=0 // pred_check_branch
    %263 = sbr.rel (%p261) target = $region25
  $region24: #{depthwise_separable_conv.3} parent=0 // pred_region
    %v264 = vld [vmem:[#allocation2] sm:$0xff]
    %vm265 = vcmask 15360
    %266 = vst.msk [vmem:[%s4] sm:$0xff] %vm265, %v264
  $region25: #{depthwise_separable_conv.3} parent=0 // pred_fallthru
    _
  // Predicated region
  $region26: #{depthwise_separable_conv.3} parent=0 // pred_check
    _
  $region27: #{depthwise_separable_conv.3} parent=0 // pred_check_branch
    %268 = sbr.rel (0) target = $region29
  $region28: #{depthwise_separable_conv.3} parent=0 // pred_region
    _
  $region29: #{depthwise_separable_conv.3} parent=0 // pred_fallthru
    _
  // Predicated region
  $region30: #{depthwise_separable_conv.3} parent=0 // pred_check
    _
  $region31: #{depthwise_separable_conv.3} parent=0 // pred_check_branch
    %270 = sbr.rel (0) target = $region33
  $region32: #{depthwise_separable_conv.3} parent=0 // pred_region
    _
  $region33: #{depthwise_separable_conv.3} parent=0 // pred_fallthru
    _

</llo_original>
